<compile_context>
chip_gen: v7x
topology: tpu7x:2x2x1
jax: 0.10.0
libtpu: 0.0.40
codegen_flags: <defaults>
</compile_context>

<pallas_src>
import functools
import math

import jax
import jax.numpy as jnp
from jax import lax
from jax.experimental import pallas as pl
from jax.experimental.pallas import tpu as pltpu


_DN = (((1,), (1,)), ((), ()))  # contract the size-3 axis of both operands


# ----------------------------------------------------------------------------
# Kernels (feature-major compute: rows live on the 128-wide lane axis)
# ----------------------------------------------------------------------------
def _pe_kernel_xy(w_x_ref, w_y_ref, x_ref, y_ref, xo_ref, yo_ref, *, half_dim):
    """Positional encoding with variance propagation (y is not None)."""
    HD = half_dim                      # 3 * num_deg
    x = x_ref[...]                     # [tm, 3]
    y = y_ref[...]                     # [tm, 3]

    # Replicate + scale on the idle MXU: feature-major [HD, tm] results.
    x_enc = lax.dot_general(w_x_ref[...], x, _DN,
                            precision=lax.Precision.HIGHEST,
                            preferred_element_type=jnp.float32)
    y_enc = lax.dot_general(w_y_ref[...], y, _DN,
                            precision=lax.Precision.HIGHEST,
                            preferred_element_type=jnp.float32)

    # Half-width transcendentals (second half of x_enc is just +pi/2).
    s_lo = jnp.sin(x_enc)              # sin(x_enc)           [HD, tm]
    s_hi = jnp.cos(x_enc)              # sin(x_enc + pi/2)    [HD, tm]
    e = jnp.exp(-0.5 * y_enc)          # exp(-0.5*y_enc), identical for both halves
    e2 = e * e
    e4 = e2 * e2                       # exp(-2*y_enc)

    xs_lo = e * s_lo                   # x_ret columns 3 .. 3+HD
    xs_hi = e * s_hi                   # x_ret columns 3+HD .. 3+2HD
    # cos(2a) = 1 - 2 sin^2(a); cos(2(a+pi/2)) = 1 - 2 cos^2(a).
    yr_lo = jnp.maximum(
        0.0, 0.5 * (1.0 - e4 * (1.0 - 2.0 * s_lo * s_lo)) - xs_lo * xs_lo)
    yr_hi = jnp.maximum(
        0.0, 0.5 * (1.0 - e4 * (1.0 - 2.0 * s_hi * s_hi)) - xs_hi * xs_hi)

    # Direct row-major sub-slice stores: no pad, no concat, no slice copy.
    xo_ref[:, 0:3] = x
    xo_ref[:, 3:3 + HD] = xs_lo.T
    xo_ref[:, 3 + HD:3 + 2 * HD] = xs_hi.T
    yo_ref[:, 0:HD] = yr_lo.T
    yo_ref[:, HD:2 * HD] = yr_hi.T


def _pe_kernel_x(w_x_ref, x_ref, xo_ref, *, half_dim):
    """Positional encoding without y."""
    HD = half_dim
    x = x_ref[...]                     # [tm, 3]
    x_enc = lax.dot_general(w_x_ref[...], x, _DN,
                            precision=lax.Precision.HIGHEST,
                            preferred_element_type=jnp.float32)  # [HD, tm]

    xo_ref[:, 0:3] = x
    xo_ref[:, 3:3 + HD] = jnp.sin(x_enc).T
    xo_ref[:, 3 + HD:3 + 2 * HD] = jnp.cos(x_enc).T


# ----------------------------------------------------------------------------
# Wrapper
# ----------------------------------------------------------------------------
class PositionalEncodingPallas:
    """Pallas TPU equivalent of the PyTorch PositionalEncoding module."""

    def __init__(self, min_deg, max_deg, tile_rows=4096):
        self.min_deg = int(min_deg)
        self.max_deg = int(max_deg)
        self.num_deg = self.max_deg - self.min_deg
        self.scales = tuple(float(2.0 ** i) for i in range(min_deg, max_deg))

        D = self.num_deg
        HD = 3 * D
        # Constant "replicate + scale" matrices, passed as kernel inputs
        # (fixes the captured-constant tracing error).
        w_x = [[self.scales[r // 3] if c == (r % 3) else 0.0 for c in range(3)]
               for r in range(HD)]
        w_y = [[self.scales[r // 3] ** 2 if c == (r % 3) else 0.0 for c in range(3)]
               for r in range(HD)]
        self._w_x = jnp.array(w_x, jnp.float32)   # [HD, 3]
        self._w_y = jnp.array(w_y, jnp.float32)   # [HD, 3]

        # Rows per grid step (multiple of 8 sublanes).
        self.tile_rows = max(8, (int(tile_rows) // 8) * 8)

    def __call__(self, x, y=None):
        D = self.num_deg
        HD = 3 * D
        E = 2 * HD
        assert x.shape[-1] == 3
        lead = x.shape[:-1]
        rows = 1
        for d in lead:
            rows *= int(d)

        x2 = x.reshape(rows, 3).astype(jnp.float32)   # free reshape, no copy pass

        # Block = full rows extent when small (allowed: equals the array dim),
        # otherwise tile_rows (multiple of 8) with partial edge blocks.
        tm = self.tile_rows if rows >= self.tile_rows else rows
        grid = (pl.cdiv(rows, tm),)

        cparams = pltpu.CompilerParams(
            dimension_semantics=("parallel",),
            vmem_limit_bytes=40 * 1024 * 1024,        # headroom on v7x's 64 MiB
        )
        const_spec = pl.BlockSpec((HD, 3), lambda i: (0, 0))   # resident constants
        row_spec = pl.BlockSpec((tm, 3), lambda i: (i, 0))

        if y is not None:
            y2 = y.reshape(rows, 3).astype(jnp.float32)
            kernel = functools.partial(_pe_kernel_xy, half_dim=HD)
            x_ret, y_ret = pl.pallas_call(
                kernel,
                out_shape=(
                    jax.ShapeDtypeStruct((rows, 3 + E), jnp.float32),
                    jax.ShapeDtypeStruct((rows, E), jnp.float32),
                ),
                grid_spec=pltpu.PrefetchScalarGridSpec(
                    num_scalar_prefetch=0,
                    grid=grid,
                    in_specs=[const_spec, const_spec, row_spec, row_spec],
                    out_specs=[
                        pl.BlockSpec((tm, 3 + E), lambda i: (i, 0)),
                        pl.BlockSpec((tm, E), lambda i: (i, 0)),
                    ],
                ),
                compiler_params=cparams,
            )(self._w_x, self._w_y, x2, y2)
            return (x_ret.reshape(*lead, 3 + E), y_ret.reshape(*lead, E))

        kernel = functools.partial(_pe_kernel_x, half_dim=HD)
        x_ret = pl.pallas_call(
            kernel,
            out_shape=jax.ShapeDtypeStruct((rows, 3 + E), jnp.float32),
            grid_spec=pltpu.PrefetchScalarGridSpec(
                num_scalar_prefetch=0,
                grid=grid,
                in_specs=[const_spec, row_spec],
                out_specs=pl.BlockSpec((tm, 3 + E), lambda i: (i, 0)),
            ),
            compiler_params=cparams,
        )(self._w_x, x2)
        return x_ret.reshape(*lead, 3 + E)


# ----------------------------------------------------------------------------
# Pure-JAX reference (mirrors the torch forward exactly)
# ----------------------------------------------------------------------------
def _reference(x, y, min_deg, max_deg):
    scales = jnp.array([2.0 ** i for i in range(min_deg, max_deg)], jnp.float32)
    shape = list(x.shape[:-1]) + [-1]
    x_enc = (x[..., None, :] * scales[:, None]).reshape(shape)
    x_enc = jnp.concatenate((x_enc, x_enc + 0.5 * jnp.pi), -1)
    if y is not None:
        y_enc = (y[..., None, :] * scales[:, None] ** 2).reshape(shape)
        y_enc = jnp.concatenate((y_enc, y_enc), -1)
        x_ret = jnp.exp(-0.5 * y_enc) * jnp.sin(x_enc)
        y_ret = jnp.maximum(
            jnp.zeros_like(y_enc),
            0.5 * (1 - jnp.exp(-2 * y_enc) * jnp.cos(2 * x_enc)) - x_ret ** 2,
        )
        x_ret = jnp.concatenate([x, x_ret], -1)
        return x_ret, y_ret
    else:
        x_ret = jnp.sin(x_enc)
        return jnp.concatenate([x, x_ret], -1)


# ----------------------------------------------------------------------------
if __name__ == "__main__":
    min_deg, max_deg = 0, 4          # D = 4 -> E = 24
    B, N = 2, 16

    key = jax.random.PRNGKey(0)
    kx, ky = jax.random.split(key)
    x = jax.random.normal(kx, (B, N, 3), dtype=jnp.float32)
    y = jax.nn.softplus(jax.random.normal(ky, (B, N, 3), dtype=jnp.float32))

    pe = PositionalEncodingPallas(min_deg, max_deg)

    # path with y
    x_ret, y_ret = pe(x, y)
    jax.block_until_ready((x_ret, y_ret))
    x_exp, y_exp = _reference(x, y, min_deg, max_deg)
    assert x_ret.shape == (B, N, 3 + 24) and y_ret.shape == (B, N, 24)
    assert jnp.allclose(x_ret, x_exp, atol=1e-5, rtol=1e-5)
    assert jnp.allclose(y_ret, y_exp, atol=1e-5, rtol=1e-5)

    # path without y
    x_only = pe(x)
    jax.block_until_ready(x_only)
    x_only_exp = _reference(x, None, min_deg, max_deg)
    assert x_only.shape == (B, N, 3 + 24)
    assert jnp.allclose(x_only, x_only_exp, atol=1e-5, rtol=1e-5)

    print("KERNEL_OK")
</pallas_src>

<mosaic_0001>
module attributes {stable_mosaic.version = 11 : i64} {
  func.func @_pe_kernel_xy(%arg0: i32, %arg1: memref<12x3xf32, #tpu.memory_space<vmem>>, %arg2: memref<12x3xf32, #tpu.memory_space<vmem>>, %arg3: memref<32x3xf32, #tpu.memory_space<vmem>>, %arg4: memref<32x3xf32, #tpu.memory_space<vmem>>, %arg5: memref<32x27xf32, #tpu.memory_space<vmem>>, %arg6: memref<32x24xf32, #tpu.memory_space<vmem>>) attributes {dimension_semantics = [#tpu.dimension_semantics<parallel>], iteration_bounds = array<i64: 1>, scalar_prefetch = 0 : i64, scratch_operands = 0 : i64, tpu.core_type = #tpu.core_type<tc>, window_params = [{pipeline_mode = #tpu.pipeline_mode<synchronous>, transform_indices = @transform_0, window_bounds = array<i64: 12, 3>}, {pipeline_mode = #tpu.pipeline_mode<synchronous>, transform_indices = @transform_1, window_bounds = array<i64: 12, 3>}, {transform_indices = @transform_2, window_bounds = array<i64: 32, 3>}, {transform_indices = @transform_3, window_bounds = array<i64: 32, 3>}, {transform_indices = @transform_4, window_bounds = array<i64: 32, 27>}, {transform_indices = @transform_5, window_bounds = array<i64: 32, 24>}]} {
    %c0 = arith.constant 0 : index
    %c0_0 = arith.constant 0 : index
    %0 = vector.load %arg3[%c0, %c0_0] : memref<32x3xf32, #tpu.memory_space<vmem>>, vector<32x3xf32>
    %c0_1 = arith.constant 0 : index
    %c0_2 = arith.constant 0 : index
    %1 = vector.load %arg4[%c0_1, %c0_2] : memref<32x3xf32, #tpu.memory_space<vmem>>, vector<32x3xf32>
    %c0_3 = arith.constant 0 : index
    %c0_4 = arith.constant 0 : index
    %2 = vector.load %arg1[%c0_3, %c0_4] : memref<12x3xf32, #tpu.memory_space<vmem>>, vector<12x3xf32>
    %cst = arith.constant dense<0.000000e+00> : vector<12x32xf32>
    %3 = tpu.matmul %2, %0, %cst {dimension_numbers = #tpu.dot_dimension_numbers<[1], [1], [0], [0], [0, 0, 1, 0], [], []>, precision = #tpu.contract_precision<fp32>} : vector<12x3xf32>, vector<32x3xf32>, vector<12x32xf32> -> vector<12x32xf32>
    %c0_5 = arith.constant 0 : index
    %c0_6 = arith.constant 0 : index
    %4 = vector.load %arg2[%c0_5, %c0_6] : memref<12x3xf32, #tpu.memory_space<vmem>>, vector<12x3xf32>
    %cst_7 = arith.constant dense<0.000000e+00> : vector<12x32xf32>
    %5 = tpu.matmul %4, %1, %cst_7 {dimension_numbers = #tpu.dot_dimension_numbers<[1], [1], [0], [0], [0, 0, 1, 0], [], []>, precision = #tpu.contract_precision<fp32>} : vector<12x3xf32>, vector<32x3xf32>, vector<12x32xf32> -> vector<12x32xf32>
    %6 = math.sin %3 : vector<12x32xf32>
    %7 = math.cos %3 : vector<12x32xf32>
    %cst_8 = arith.constant -5.000000e-01 : f32
    %8 = vector.broadcast %cst_8 : f32 to vector<12x32xf32>
    %9 = arith.mulf %8, %5 : vector<12x32xf32>
    %10 = math.exp %9 : vector<12x32xf32>
    %11 = arith.mulf %10, %10 : vector<12x32xf32>
    %12 = arith.mulf %11, %11 : vector<12x32xf32>
    %13 = arith.mulf %10, %6 : vector<12x32xf32>
    %14 = arith.mulf %10, %7 : vector<12x32xf32>
    %cst_9 = arith.constant 2.000000e+00 : f32
    %15 = vector.broadcast %cst_9 : f32 to vector<12x32xf32>
    %16 = arith.mulf %15, %6 : vector<12x32xf32>
    %17 = arith.mulf %16, %6 : vector<12x32xf32>
    %cst_10 = arith.constant 1.000000e+00 : f32
    %18 = vector.broadcast %cst_10 : f32 to vector<12x32xf32>
    %19 = arith.subf %18, %17 : vector<12x32xf32>
    %20 = arith.mulf %12, %19 : vector<12x32xf32>
    %cst_11 = arith.constant 1.000000e+00 : f32
    %21 = vector.broadcast %cst_11 : f32 to vector<12x32xf32>
    %22 = arith.subf %21, %20 : vector<12x32xf32>
    %cst_12 = arith.constant 5.000000e-01 : f32
    %23 = vector.broadcast %cst_12 : f32 to vector<12x32xf32>
    %24 = arith.mulf %23, %22 : vector<12x32xf32>
    %25 = arith.mulf %13, %13 : vector<12x32xf32>
    %26 = arith.subf %24, %25 : vector<12x32xf32>
    %cst_13 = arith.constant 0.000000e+00 : f32
    %27 = vector.broadcast %cst_13 : f32 to vector<12x32xf32>
    %28 = arith.maximumf %27, %26 : vector<12x32xf32>
    %cst_14 = arith.constant 2.000000e+00 : f32
    %29 = vector.broadcast %cst_14 : f32 to vector<12x32xf32>
    %30 = arith.mulf %29, %7 : vector<12x32xf32>
    %31 = arith.mulf %30, %7 : vector<12x32xf32>
    %cst_15 = arith.constant 1.000000e+00 : f32
    %32 = vector.broadcast %cst_15 : f32 to vector<12x32xf32>
    %33 = arith.subf %32, %31 : vector<12x32xf32>
    %34 = arith.mulf %12, %33 : vector<12x32xf32>
    %cst_16 = arith.constant 1.000000e+00 : f32
    %35 = vector.broadcast %cst_16 : f32 to vector<12x32xf32>
    %36 = arith.subf %35, %34 : vector<12x32xf32>
    %cst_17 = arith.constant 5.000000e-01 : f32
    %37 = vector.broadcast %cst_17 : f32 to vector<12x32xf32>
    %38 = arith.mulf %37, %36 : vector<12x32xf32>
    %39 = arith.mulf %14, %14 : vector<12x32xf32>
    %40 = arith.subf %38, %39 : vector<12x32xf32>
    %cst_18 = arith.constant 0.000000e+00 : f32
    %41 = vector.broadcast %cst_18 : f32 to vector<12x32xf32>
    %42 = arith.maximumf %41, %40 : vector<12x32xf32>
    %c0_19 = arith.constant 0 : index
    %c0_20 = arith.constant 0 : index
    %43 = vector.load %arg5[%c0_19, %c0_20] : memref<32x27xf32, #tpu.memory_space<vmem>>, vector<32x3xf32>
    tpu.vector_store %arg5[%c0_19, %c0_20], %0 {strides = array<i32>} : memref<32x27xf32, #tpu.memory_space<vmem>>, vector<32x3xf32>,
    %44 = tpu.transpose %13, [1, 0] : vector<12x32xf32> -> vector<32x12xf32>
    %c0_21 = arith.constant 0 : index
    %c3 = arith.constant 3 : index
    %45 = vector.load %arg5[%c0_21, %c3] : memref<32x27xf32, #tpu.memory_space<vmem>>, vector<32x12xf32>
    tpu.vector_store %arg5[%c0_21, %c3], %44 {strides = array<i32>} : memref<32x27xf32, #tpu.memory_space<vmem>>, vector<32x12xf32>,
    %46 = tpu.transpose %14, [1, 0] : vector<12x32xf32> -> vector<32x12xf32>
    %c0_22 = arith.constant 0 : index
    %c15 = arith.constant 15 : index
    %47 = vector.load %arg5[%c0_22, %c15] : memref<32x27xf32, #tpu.memory_space<vmem>>, vector<32x12xf32>
    tpu.vector_store %arg5[%c0_22, %c15], %46 {strides = array<i32>} : memref<32x27xf32, #tpu.memory_space<vmem>>, vector<32x12xf32>,
    %48 = tpu.transpose %28, [1, 0] : vector<12x32xf32> -> vector<32x12xf32>
    %c0_23 = arith.constant 0 : index
    %c0_24 = arith.constant 0 : index
    %49 = vector.load %arg6[%c0_23, %c0_24] : memref<32x24xf32, #tpu.memory_space<vmem>>, vector<32x12xf32>
    tpu.vector_store %arg6[%c0_23, %c0_24], %48 {strides = array<i32>} : memref<32x24xf32, #tpu.memory_space<vmem>>, vector<32x12xf32>,
    %50 = tpu.transpose %42, [1, 0] : vector<12x32xf32> -> vector<32x12xf32>
    %c0_25 = arith.constant 0 : index
    %c12 = arith.constant 12 : index
    %51 = vector.load %arg6[%c0_25, %c12] : memref<32x24xf32, #tpu.memory_space<vmem>>, vector<32x12xf32>
    tpu.vector_store %arg6[%c0_25, %c12], %50 {strides = array<i32>} : memref<32x24xf32, #tpu.memory_space<vmem>>, vector<32x12xf32>,
    return
  }
  func.func @transform_0(%arg0: i32) -> (i32, i32) {
    %c0_i32 = arith.constant 0 : i32
    %c0_i32_0 = arith.constant 0 : i32
    %c0_i32_1 = arith.constant 0 : i32
    return %c0_i32, %c0_i32_0 : i32, i32
  }
  func.func @transform_1(%arg0: i32) -> (i32, i32) {
    %c0_i32 = arith.constant 0 : i32
    %c0_i32_0 = arith.constant 0 : i32
    %c0_i32_1 = arith.constant 0 : i32
    return %c0_i32, %c0_i32_0 : i32, i32
  }
  func.func @transform_2(%arg0: i32) -> (i32, i32) {
    %c0_i32 = arith.constant 0 : i32
    %c0_i32_0 = arith.constant 0 : i32
    return %arg0, %c0_i32 : i32, i32
  }
  func.func @transform_3(%arg0: i32) -> (i32, i32) {
    %c0_i32 = arith.constant 0 : i32
    %c0_i32_0 = arith.constant 0 : i32
    return %arg0, %c0_i32 : i32, i32
  }
  func.func @transform_4(%arg0: i32) -> (i32, i32) {
    %c0_i32 = arith.constant 0 : i32
    %c0_i32_0 = arith.constant 0 : i32
    return %arg0, %c0_i32 : i32, i32
  }
  func.func @transform_5(%arg0: i32) -> (i32, i32) {
    %c0_i32 = arith.constant 0 : i32
    %c0_i32_0 = arith.constant 0 : i32
    return %arg0, %c0_i32 : i32, i32
  }
}

</mosaic_0001>

<llo_original>
// kernel: tpu_custom_call.1
$region0: #{tpu_custom_call.1}
  #allocation0 [shape = 'u32[]', space=smem, size = 0x4, offset = 0x4, fixed_abs, tag = 'smem constant byte address 0x4 - core index']
  #allocation1 [shape = 'u32[144,128]{1,0:T(1,128)}', space=vmem, size = 0x12000, scoped, tag = 'internal scratch']
  %s0 = inlined_call_operand.vmem [shape: f32[12,3], index: 0, kind: input, shape index: {}]
  %s1 = inlined_call_operand.vmem [shape: f32[12,3], index: 1, kind: input, shape index: {}]
  %s2 = inlined_call_operand.vmem [shape: f32[32,3], index: 2, kind: input, shape index: {}]
  %s3 = inlined_call_operand.vmem [shape: f32[32,3], index: 3, kind: input, shape index: {}]
  %s4 = inlined_call_operand.hbm [shape: f32[32,27], index: 4, kind: output, shape index: {0}]
  %s5 = inlined_call_operand.vmem [shape: f32[32,24], index: 5, kind: output, shape index: {1}]
  %6 = xla_tuple %s4, %s5
  %s7 = sld [smem:[#allocation0]]
  $region34: #{tpu_custom_call.1} parent=0
    _
  %s9 = ssub.s32 1, %s7
  %s10 = scalar_select 0, %s9, %s7
  $region1: #{tpu_custom_call.1} parent=0
    #allocation2 [shape = 'u8[16384]{0}', space=vmem, size = 0x4000, scoped, tag = 'output window, operand 0, single buffered']
    #allocation3 [shape = 's32[1]{0}', space=sflag, size = 0x4, scoped, tag = 'scoped memory for tpu_custom_call.1']
    %11 = vsyncpa [#allocation3], 0
    // Predicated region
    $region2: #{tpu_custom_call.1} parent=1 // pred_check
      _
    $region3: #{tpu_custom_call.1} parent=1 // pred_check_branch
      %13 = sbr.rel (0) target = $region5
    $region4: #{tpu_custom_call.1} parent=1 // pred_region
      _
    $region5: #{tpu_custom_call.1} parent=1 // pred_fallthru
      _
    // Predicated region
    $region6: #{tpu_custom_call.1} parent=1 // pred_check
      _
    $region7: #{tpu_custom_call.1} parent=1 // pred_check_branch
      %15 = sbr.rel (0) target = $region9
    $region8: #{tpu_custom_call.1} parent=1 // pred_region
      _
    $region9: #{tpu_custom_call.1} parent=1 // pred_fallthru
      _
    // Predicated region
    $region10: #{tpu_custom_call.1} parent=1 // pred_check
      _
    $region11: #{tpu_custom_call.1} parent=1 // pred_check_branch
      %17 = sbr.rel (0) target = $region13
    $region12: #{tpu_custom_call.1} parent=1 // pred_region
      _
    $region13: #{tpu_custom_call.1} parent=1 // pred_fallthru
      _
    // Predicated region
    $region14: #{tpu_custom_call.1} parent=1 // pred_check
      _
    $region15: #{tpu_custom_call.1} parent=1 // pred_check_branch
      %19 = sbr.rel (0) target = $region17
    $region16: #{tpu_custom_call.1} parent=1 // pred_region
      _
    $region17: #{tpu_custom_call.1} parent=1 // pred_fallthru
      _
    %v20 = vld [vmem:[%s2] sm:$0xff]
    %v21 = vld [vmem:[%s2 + $0x8] sm:$0xff]
    %v22 = vld [vmem:[%s2 + $0x10] sm:$0xff]
    %v23 = vld [vmem:[%s2 + $0x18] sm:$0xff]
    %v24 = vld [vmem:[%s3] sm:$0xff]
    %v25 = vld [vmem:[%s3 + $0x8] sm:$0xff]
    %v26 = vld [vmem:[%s3 + $0x10] sm:$0xff]
    %v27 = vld [vmem:[%s3 + $0x18] sm:$0xff]
    %v28 = vld [vmem:[%s0] sm:$0xff]
    %v29 = vld [vmem:[%s0 + $0x8] sm:$0xf]
    %vm30 = vcmask 23552
    %v32 = vsel %vm30, %v28, 0
    %v35 = vsel %vm30, %v29, 0
    %v38 = vsel %vm30, %v20, 0
    %v41 = vsel %vm30, %v21, 0
    %v44 = vsel %vm30, %v22, 0
    %v47 = vsel %vm30, %v23, 0
    %49 = vmatprep.subr.mxu0 0.0
    %v50 = vand.u32 %v38, 4294901760
    %51 = vmatpush1.xpose.msra.mxu0 %v50
    %52 = vmatprep.subr.mxu0 0.0
    %v53 = vand.u32 %v41, 4294901760
    %54 = vmatpush1.xpose.msra.mxu0 %v53
    %55 = vmatprep.subr.mxu0 0.0
    %v56 = vand.u32 %v44, 4294901760
    %57 = vmatpush1.xpose.msra.mxu0 %v56
    %58 = vmatprep.subr.mxu0 0.0
    %v59 = vand.u32 %v47, 4294901760
    %60 = vmatpush1.xpose.msra.mxu0 %v59
    %61 = vmatprep.subr.mxu0 0.0
    %62 = vmatpush1.xpose.msra.mxu0 0.0
    %63 = vmatprep.subr.mxu0 0.0
    %64 = vmatpush1.xpose.msra.mxu0 0.0
    %65 = vmatprep.subr.mxu0 0.0
    %66 = vmatpush1.xpose.msra.mxu0 0.0
    %67 = vmatprep.subr.mxu0 0.0
    %68 = vmatpush1.xpose.msra.mxu0 0.0
    %69 = vmatprep.subr.mxu0 0.0
    %70 = vmatpush1.xpose.msra.mxu0 0.0
    %71 = vmatprep.subr.mxu0 0.0
    %72 = vmatpush1.xpose.msra.mxu0 0.0
    %73 = vmatprep.subr.mxu0 0.0
    %74 = vmatpush1.xpose.msra.mxu0 0.0
    %75 = vmatprep.subr.mxu0 0.0
    %76 = vmatpush1.xpose.msra.mxu0 0.0
    %77 = vmatprep.subr.mxu0 0.0
    %78 = vmatpush1.xpose.msra.mxu0 0.0
    %79 = vmatprep.subr.mxu0 0.0
    %80 = vmatpush1.xpose.msra.mxu0 0.0
    %81 = vmatprep.subr.mxu0 0.0
    %82 = vmatpush1.xpose.msra.mxu0 0.0
    %83 = vmatprep.subr.mxu0 0.0
    %84 = vmatpush1.xpose.msra.mxu0 0.0
    %85 = vmatprep.subr.mxu0 0.0
    %86 = vmatpush1.xpose.msra.mxu0 0.0
    %87 = vmatprep.subr.mxu0 0.0
    %88 = vmatpush1.xpose.msra.mxu0 0.0
    %89 = vmatprep.subr.mxu0 0.0
    %90 = vmatpush1.xpose.msra.mxu0 0.0
    %91 = vmatprep.subr.mxu0 0.0
    %92 = vmatpush1.xpose.msra.mxu0 0.0
    %93 = vmatprep.subr.mxu0 0.0
    %94 = vmatpush1.xpose.msra.mxu0 0.0
    %95 = vmatprep.subr.mxu0 0.0
    %96 = vmatpush1.xpose.msra.mxu0 0.0
    %97 = vmatprep.subr.mxu0 0.0
    %98 = vmatpush1.xpose.msra.mxu0 0.0
    %99 = vmatprep.subr.mxu0 0.0
    %100 = vmatpush1.xpose.msra.mxu0 0.0
    %101 = vmatprep.subr.mxu0 0.0
    %102 = vmatpush1.xpose.msra.mxu0 0.0
    %103 = vmatprep.subr.mxu0 0.0
    %104 = vmatpush1.xpose.msra.mxu0 0.0
    %105 = vmatprep.subr.mxu0 0.0
    %106 = vmatpush1.xpose.msra.mxu0 0.0
    %107 = vmatprep.subr.mxu0 0.0
    %108 = vmatpush1.xpose.msra.mxu0 0.0
    %109 = vmatprep.subr.mxu0 0.0
    %110 = vmatpush1.xpose.msra.mxu0 0.0
    %111 = vmatprep.subr.mxu0 0.0
    %112 = vmatpush1.xpose.msra.mxu0 0.0
    %113 = vmatprep.subr.mxu0 0.0
    %114 = vmatpush1.xpose.msra.mxu0 0.0
    %115 = vmatprep.subr.mxu0 0.0
    %116 = vmatpush1.xpose.msra.mxu0 0.0
    %117 = vmatprep.mubr.f32.mxu0 0.0
    %v118 = vand.u32 %v32, 4294901760
    %v119 = vsub.f32 %v32, %v118
    %v120 = vand.u32 %v119, 4294901760
    %v121 = vsub.f32 %v119, %v120
    %v122 = vand.u32 %v121, 4294901760
    %123 = vmatmul.mubr.f32.gmra.mrb[0].mxu0 %v122
    %v124 = vpop.f32.mrb[0].mxu0
    %v125 = vadd.f32 0.0, %v124
    %v126 = vpop.f32.mrb[0].mxu0
    %127 = vmatprep.mubr.f32.mxu0 0.0
    %v128 = vand.u32 %v35, 4294901760
    %v129 = vsub.f32 %v35, %v128
    %v130 = vand.u32 %v129, 4294901760
    %v131 = vsub.f32 %v129, %v130
    %v132 = vand.u32 %v131, 4294901760
    %133 = vmatmul.mubr.f32.gmra.mrb[0].mxu0 %v132
    %v134 = vpop.f32.mrb[0].mxu0
    %v135 = vadd.f32 0.0, %v134
    %v136 = vpop.f32.mrb[0].mxu0
    %137 = vdwg.mxu0
    %138 = vmatprep.subr.mxu0 0.0
    %v139 = vand.u32 %v38, 4294901760
    %v140 = vsub.f32 %v38, %v139
    %v141 = vand.u32 %v140, 4294901760
    %v142 = vsub.f32 %v140, %v141
    %v143 = vand.u32 %v142, 4294901760
    %144 = vmatpush1.xpose.msra.mxu0 %v143
    %145 = vmatprep.subr.mxu0 0.0
    %v146 = vand.u32 %v41, 4294901760
    %v147 = vsub.f32 %v41, %v146
    %v148 = vand.u32 %v147, 4294901760
    %v149 = vsub.f32 %v147, %v148
    %v150 = vand.u32 %v149, 4294901760
    %151 = vmatpush1.xpose.msra.mxu0 %v150
    %152 = vmatprep.subr.mxu0 0.0
    %v153 = vand.u32 %v44, 4294901760
    %v154 = vsub.f32 %v44, %v153
    %v155 = vand.u32 %v154, 4294901760
    %v156 = vsub.f32 %v154, %v155
    %v157 = vand.u32 %v156, 4294901760
    %158 = vmatpush1.xpose.msra.mxu0 %v157
    %159 = vmatprep.subr.mxu0 0.0
    %v160 = vand.u32 %v47, 4294901760
    %v161 = vsub.f32 %v47, %v160
    %v162 = vand.u32 %v161, 4294901760
    %v163 = vsub.f32 %v161, %v162
    %v164 = vand.u32 %v163, 4294901760
    %165 = vmatpush1.xpose.msra.mxu0 %v164
    %166 = vmatprep.subr.mxu0 0.0
    %167 = vmatpush1.xpose.msra.mxu0 0.0
    %168 = vmatprep.subr.mxu0 0.0
    %169 = vmatpush1.xpose.msra.mxu0 0.0
    %170 = vmatprep.subr.mxu0 0.0
    %171 = vmatpush1.xpose.msra.mxu0 0.0
    %172 = vmatprep.subr.mxu0 0.0
    %173 = vmatpush1.xpose.msra.mxu0 0.0
    %174 = vmatprep.subr.mxu0 0.0
    %175 = vmatpush1.xpose.msra.mxu0 0.0
    %176 = vmatprep.subr.mxu0 0.0
    %177 = vmatpush1.xpose.msra.mxu0 0.0
    %178 = vmatprep.subr.mxu0 0.0
    %179 = vmatpush1.xpose.msra.mxu0 0.0
    %180 = vmatprep.subr.mxu0 0.0
    %181 = vmatpush1.xpose.msra.mxu0 0.0
    %182 = vmatprep.subr.mxu0 0.0
    %183 = vmatpush1.xpose.msra.mxu0 0.0
    %184 = vmatprep.subr.mxu0 0.0
    %185 = vmatpush1.xpose.msra.mxu0 0.0
    %186 = vmatprep.subr.mxu0 0.0
    %187 = vmatpush1.xpose.msra.mxu0 0.0
    %188 = vmatprep.subr.mxu0 0.0
    %189 = vmatpush1.xpose.msra.mxu0 0.0
    %190 = vmatprep.subr.mxu0 0.0
    %191 = vmatpush1.xpose.msra.mxu0 0.0
    %192 = vmatprep.subr.mxu0 0.0
    %193 = vmatpush1.xpose.msra.mxu0 0.0
    %194 = vmatprep.subr.mxu0 0.0
    %195 = vmatpush1.xpose.msra.mxu0 0.0
    %196 = vmatprep.subr.mxu0 0.0
    %197 = vmatpush1.xpose.msra.mxu0 0.0
    %198 = vmatprep.subr.mxu0 0.0
    %199 = vmatpush1.xpose.msra.mxu0 0.0
    %200 = vmatprep.subr.mxu0 0.0
    %201 = vmatpush1.xpose.msra.mxu0 0.0
    %202 = vmatprep.subr.mxu0 0.0
    %203 = vmatpush1.xpose.msra.mxu0 0.0
    %204 = vmatprep.subr.mxu0 0.0
    %205 = vmatpush1.xpose.msra.mxu0 0.0
    %206 = vmatprep.subr.mxu0 0.0
    %207 = vmatpush1.xpose.msra.mxu0 0.0
    %208 = vmatprep.subr.mxu0 0.0
    %209 = vmatpush1.xpose.msra.mxu0 0.0
    %210 = vmatprep.subr.mxu0 0.0
    %211 = vmatpush1.xpose.msra.mxu0 0.0
    %212 = vmatprep.subr.mxu0 0.0
    %213 = vmatpush1.xpose.msra.mxu0 0.0
    %214 = vmatprep.subr.mxu0 0.0
    %215 = vmatpush1.xpose.msra.mxu0 0.0
    %216 = vmatprep.subr.mxu0 0.0
    %217 = vmatpush1.xpose.msra.mxu0 0.0
    %218 = vmatprep.subr.mxu0 0.0
    %219 = vmatpush1.xpose.msra.mxu0 0.0
    %220 = vmatprep.subr.mxu0 0.0
    %221 = vmatpush1.xpose.msra.mxu0 0.0
    %222 = vmatprep.mubr.f32.mxu0 0.0
    %v223 = vand.u32 %v32, 4294901760
    %224 = vmatmul.mubr.f32.gmra.mrb[0].mxu0 %v223
    %v225 = vpop.f32.mrb[0].mxu0
    %v226 = vadd.f32 %v125, %v225
    %v227 = vpop.f32.mrb[0].mxu0
    %228 = vmatprep.mubr.f32.mxu0 0.0
    %v229 = vand.u32 %v35, 4294901760
    %230 = vmatmul.mubr.f32.gmra.mrb[0].mxu0 %v229
    %v231 = vpop.f32.mrb[0].mxu0
    %v232 = vadd.f32 %v135, %v231
    %v233 = vpop.f32.mrb[0].mxu0
    %234 = vdwg.mxu0
    %235 = vmatprep.subr.mxu0 0.0
    %v236 = vand.u32 %v38, 4294901760
    %v237 = vsub.f32 %v38, %v236
    %238 = vmatpush1.xpose.msra.mxu0 %v237
    %239 = vmatprep.subr.mxu0 0.0
    %v240 = vand.u32 %v41, 4294901760
    %v241 = vsub.f32 %v41, %v240
    %242 = vmatpush1.xpose.msra.mxu0 %v241
    %243 = vmatprep.subr.mxu0 0.0
    %v244 = vand.u32 %v44, 4294901760
    %v245 = vsub.f32 %v44, %v244
    %246 = vmatpush1.xpose.msra.mxu0 %v245
    %247 = vmatprep.subr.mxu0 0.0
    %v248 = vand.u32 %v47, 4294901760
    %v249 = vsub.f32 %v47, %v248
    %250 = vmatpush1.xpose.msra.mxu0 %v249
    %251 = vmatprep.subr.mxu0 0.0
    %252 = vmatpush1.xpose.msra.mxu0 0.0
    %253 = vmatprep.subr.mxu0 0.0
    %254 = vmatpush1.xpose.msra.mxu0 0.0
    %255 = vmatprep.subr.mxu0 0.0
    %256 = vmatpush1.xpose.msra.mxu0 0.0
    %257 = vmatprep.subr.mxu0 0.0
    %258 = vmatpush1.xpose.msra.mxu0 0.0
    %259 = vmatprep.subr.mxu0 0.0
    %260 = vmatpush1.xpose.msra.mxu0 0.0
    %261 = vmatprep.subr.mxu0 0.0
    %262 = vmatpush1.xpose.msra.mxu0 0.0
    %263 = vmatprep.subr.mxu0 0.0
    %264 = vmatpush1.xpose.msra.mxu0 0.0
    %265 = vmatprep.subr.mxu0 0.0
    %266 = vmatpush1.xpose.msra.mxu0 0.0
    %267 = vmatprep.subr.mxu0 0.0
    %268 = vmatpush1.xpose.msra.mxu0 0.0
    %269 = vmatprep.subr.mxu0 0.0
    %270 = vmatpush1.xpose.msra.mxu0 0.0
    %271 = vmatprep.subr.mxu0 0.0
    %272 = vmatpush1.xpose.msra.mxu0 0.0
    %273 = vmatprep.subr.mxu0 0.0
    %274 = vmatpush1.xpose.msra.mxu0 0.0
    %275 = vmatprep.subr.mxu0 0.0
    %276 = vmatpush1.xpose.msra.mxu0 0.0
    %277 = vmatprep.subr.mxu0 0.0
    %278 = vmatpush1.xpose.msra.mxu0 0.0
    %279 = vmatprep.subr.mxu0 0.0
    %280 = vmatpush1.xpose.msra.mxu0 0.0
    %281 = vmatprep.subr.mxu0 0.0
    %282 = vmatpush1.xpose.msra.mxu0 0.0
    %283 = vmatprep.subr.mxu0 0.0
    %284 = vmatpush1.xpose.msra.mxu0 0.0
    %285 = vmatprep.subr.mxu0 0.0
    %286 = vmatpush1.xpose.msra.mxu0 0.0
    %287 = vmatprep.subr.mxu0 0.0
    %288 = vmatpush1.xpose.msra.mxu0 0.0
    %289 = vmatprep.subr.mxu0 0.0
    %290 = vmatpush1.xpose.msra.mxu0 0.0
    %291 = vmatprep.subr.mxu0 0.0
    %292 = vmatpush1.xpose.msra.mxu0 0.0
    %293 = vmatprep.subr.mxu0 0.0
    %294 = vmatpush1.xpose.msra.mxu0 0.0
    %295 = vmatprep.subr.mxu0 0.0
    %296 = vmatpush1.xpose.msra.mxu0 0.0
    %297 = vmatprep.subr.mxu0 0.0
    %298 = vmatpush1.xpose.msra.mxu0 0.0
    %299 = vmatprep.subr.mxu0 0.0
    %300 = vmatpush1.xpose.msra.mxu0 0.0
    %301 = vmatprep.subr.mxu0 0.0
    %302 = vmatpush1.xpose.msra.mxu0 0.0
    %303 = vmatprep.subr.mxu0 0.0
    %304 = vmatpush1.xpose.msra.mxu0 0.0
    %305 = vmatprep.subr.mxu0 0.0
    %306 = vmatpush1.xpose.msra.mxu0 0.0
    %307 = vmatprep.mubr.f32.mxu0 0.0
    %v308 = vand.u32 %v32, 4294901760
    %v309 = vsub.f32 %v32, %v308
    %310 = vmatmul.mubr.f32.gmra.mrb[0].mxu0 %v309
    %v311 = vpop.f32.mrb[0].mxu0
    %v312 = vadd.f32 %v226, %v311
    %v313 = vpop.f32.mrb[0].mxu0
    %314 = vmatprep.mubr.f32.mxu0 0.0
    %v315 = vand.u32 %v35, 4294901760
    %v316 = vsub.f32 %v35, %v315
    %317 = vmatmul.mubr.f32.gmra.mrb[0].mxu0 %v316
    %v318 = vpop.f32.mrb[0].mxu0
    %v319 = vadd.f32 %v232, %v318
    %v320 = vpop.f32.mrb[0].mxu0
    %321 = vdwg.mxu0
    %322 = vmatprep.subr.mxu0 0.0
    %v323 = vand.u32 %v38, 4294901760
    %324 = vmatpush1.xpose.msra.mxu0 %v323
    %325 = vmatprep.subr.mxu0 0.0
    %v326 = vand.u32 %v41, 4294901760
    %327 = vmatpush1.xpose.msra.mxu0 %v326
    %328 = vmatprep.subr.mxu0 0.0
    %v329 = vand.u32 %v44, 4294901760
    %330 = vmatpush1.xpose.msra.mxu0 %v329
    %331 = vmatprep.subr.mxu0 0.0
    %v332 = vand.u32 %v47, 4294901760
    %333 = vmatpush1.xpose.msra.mxu0 %v332
    %334 = vmatprep.subr.mxu0 0.0
    %335 = vmatpush1.xpose.msra.mxu0 0.0
    %336 = vmatprep.subr.mxu0 0.0
    %337 = vmatpush1.xpose.msra.mxu0 0.0
    %338 = vmatprep.subr.mxu0 0.0
    %339 = vmatpush1.xpose.msra.mxu0 0.0
    %340 = vmatprep.subr.mxu0 0.0
    %341 = vmatpush1.xpose.msra.mxu0 0.0
    %342 = vmatprep.subr.mxu0 0.0
    %343 = vmatpush1.xpose.msra.mxu0 0.0
    %344 = vmatprep.subr.mxu0 0.0
    %345 = vmatpush1.xpose.msra.mxu0 0.0
    %346 = vmatprep.subr.mxu0 0.0
    %347 = vmatpush1.xpose.msra.mxu0 0.0
    %348 = vmatprep.subr.mxu0 0.0
    %349 = vmatpush1.xpose.msra.mxu0 0.0
    %350 = vmatprep.subr.mxu0 0.0
    %351 = vmatpush1.xpose.msra.mxu0 0.0
    %352 = vmatprep.subr.mxu0 0.0
    %353 = vmatpush1.xpose.msra.mxu0 0.0
    %354 = vmatprep.subr.mxu0 0.0
    %355 = vmatpush1.xpose.msra.mxu0 0.0
    %356 = vmatprep.subr.mxu0 0.0
    %357 = vmatpush1.xpose.msra.mxu0 0.0
    %358 = vmatprep.subr.mxu0 0.0
    %359 = vmatpush1.xpose.msra.mxu0 0.0
    %360 = vmatprep.subr.mxu0 0.0
    %361 = vmatpush1.xpose.msra.mxu0 0.0
    %362 = vmatprep.subr.mxu0 0.0
    %363 = vmatpush1.xpose.msra.mxu0 0.0
    %364 = vmatprep.subr.mxu0 0.0
    %365 = vmatpush1.xpose.msra.mxu0 0.0
    %366 = vmatprep.subr.mxu0 0.0
    %367 = vmatpush1.xpose.msra.mxu0 0.0
    %368 = vmatprep.subr.mxu0 0.0
    %369 = vmatpush1.xpose.msra.mxu0 0.0
    %370 = vmatprep.subr.mxu0 0.0
    %371 = vmatpush1.xpose.msra.mxu0 0.0
    %372 = vmatprep.subr.mxu0 0.0
    %373 = vmatpush1.xpose.msra.mxu0 0.0
    %374 = vmatprep.subr.mxu0 0.0
    %375 = vmatpush1.xpose.msra.mxu0 0.0
    %376 = vmatprep.subr.mxu0 0.0
    %377 = vmatpush1.xpose.msra.mxu0 0.0
    %378 = vmatprep.subr.mxu0 0.0
    %379 = vmatpush1.xpose.msra.mxu0 0.0
    %380 = vmatprep.subr.mxu0 0.0
    %381 = vmatpush1.xpose.msra.mxu0 0.0
    %382 = vmatprep.subr.mxu0 0.0
    %383 = vmatpush1.xpose.msra.mxu0 0.0
    %384 = vmatprep.subr.mxu0 0.0
    %385 = vmatpush1.xpose.msra.mxu0 0.0
    %386 = vmatprep.subr.mxu0 0.0
    %387 = vmatpush1.xpose.msra.mxu0 0.0
    %388 = vmatprep.subr.mxu0 0.0
    %389 = vmatpush1.xpose.msra.mxu0 0.0
    %390 = vmatprep.mubr.f32.mxu0 0.0
    %v391 = vand.u32 %v32, 4294901760
    %v392 = vsub.f32 %v32, %v391
    %v393 = vand.u32 %v392, 4294901760
    %394 = vmatmul.mubr.f32.gmra.mrb[0].mxu0 %v393
    %v395 = vpop.f32.mrb[0].mxu0
    %v396 = vadd.f32 %v312, %v395
    %v397 = vpop.f32.mrb[0].mxu0
    %398 = vmatprep.mubr.f32.mxu0 0.0
    %v399 = vand.u32 %v35, 4294901760
    %v400 = vsub.f32 %v35, %v399
    %v401 = vand.u32 %v400, 4294901760
    %402 = vmatmul.mubr.f32.gmra.mrb[0].mxu0 %v401
    %v403 = vpop.f32.mrb[0].mxu0
    %v404 = vadd.f32 %v319, %v403
    %v405 = vpop.f32.mrb[0].mxu0
    %406 = vdwg.mxu0
    %407 = vmatprep.subr.mxu0 0.0
    %v408 = vand.u32 %v38, 4294901760
    %v409 = vsub.f32 %v38, %v408
    %v410 = vand.u32 %v409, 4294901760
    %411 = vmatpush1.xpose.msra.mxu0 %v410
    %412 = vmatprep.subr.mxu0 0.0
    %v413 = vand.u32 %v41, 4294901760
    %v414 = vsub.f32 %v41, %v413
    %v415 = vand.u32 %v414, 4294901760
    %416 = vmatpush1.xpose.msra.mxu0 %v415
    %417 = vmatprep.subr.mxu0 0.0
    %v418 = vand.u32 %v44, 4294901760
    %v419 = vsub.f32 %v44, %v418
    %v420 = vand.u32 %v419, 4294901760
    %421 = vmatpush1.xpose.msra.mxu0 %v420
    %422 = vmatprep.subr.mxu0 0.0
    %v423 = vand.u32 %v47, 4294901760
    %v424 = vsub.f32 %v47, %v423
    %v425 = vand.u32 %v424, 4294901760
    %426 = vmatpush1.xpose.msra.mxu0 %v425
    %427 = vmatprep.subr.mxu0 0.0
    %428 = vmatpush1.xpose.msra.mxu0 0.0
    %429 = vmatprep.subr.mxu0 0.0
    %430 = vmatpush1.xpose.msra.mxu0 0.0
    %431 = vmatprep.subr.mxu0 0.0
    %432 = vmatpush1.xpose.msra.mxu0 0.0
    %433 = vmatprep.subr.mxu0 0.0
    %434 = vmatpush1.xpose.msra.mxu0 0.0
    %435 = vmatprep.subr.mxu0 0.0
    %436 = vmatpush1.xpose.msra.mxu0 0.0
    %437 = vmatprep.subr.mxu0 0.0
    %438 = vmatpush1.xpose.msra.mxu0 0.0
    %439 = vmatprep.subr.mxu0 0.0
    %440 = vmatpush1.xpose.msra.mxu0 0.0
    %441 = vmatprep.subr.mxu0 0.0
    %442 = vmatpush1.xpose.msra.mxu0 0.0
    %443 = vmatprep.subr.mxu0 0.0
    %444 = vmatpush1.xpose.msra.mxu0 0.0
    %445 = vmatprep.subr.mxu0 0.0
    %446 = vmatpush1.xpose.msra.mxu0 0.0
    %447 = vmatprep.subr.mxu0 0.0
    %448 = vmatpush1.xpose.msra.mxu0 0.0
    %449 = vmatprep.subr.mxu0 0.0
    %450 = vmatpush1.xpose.msra.mxu0 0.0
    %451 = vmatprep.subr.mxu0 0.0
    %452 = vmatpush1.xpose.msra.mxu0 0.0
    %453 = vmatprep.subr.mxu0 0.0
    %454 = vmatpush1.xpose.msra.mxu0 0.0
    %455 = vmatprep.subr.mxu0 0.0
    %456 = vmatpush1.xpose.msra.mxu0 0.0
    %457 = vmatprep.subr.mxu0 0.0
    %458 = vmatpush1.xpose.msra.mxu0 0.0
    %459 = vmatprep.subr.mxu0 0.0
    %460 = vmatpush1.xpose.msra.mxu0 0.0
    %461 = vmatprep.subr.mxu0 0.0
    %462 = vmatpush1.xpose.msra.mxu0 0.0
    %463 = vmatprep.subr.mxu0 0.0
    %464 = vmatpush1.xpose.msra.mxu0 0.0
    %465 = vmatprep.subr.mxu0 0.0
    %466 = vmatpush1.xpose.msra.mxu0 0.0
    %467 = vmatprep.subr.mxu0 0.0
    %468 = vmatpush1.xpose.msra.mxu0 0.0
    %469 = vmatprep.subr.mxu0 0.0
    %470 = vmatpush1.xpose.msra.mxu0 0.0
    %471 = vmatprep.subr.mxu0 0.0
    %472 = vmatpush1.xpose.msra.mxu0 0.0
    %473 = vmatprep.subr.mxu0 0.0
    %474 = vmatpush1.xpose.msra.mxu0 0.0
    %475 = vmatprep.subr.mxu0 0.0
    %476 = vmatpush1.xpose.msra.mxu0 0.0
    %477 = vmatprep.subr.mxu0 0.0
    %478 = vmatpush1.xpose.msra.mxu0 0.0
    %479 = vmatprep.subr.mxu0 0.0
    %480 = vmatpush1.xpose.msra.mxu0 0.0
    %481 = vmatprep.subr.mxu0 0.0
    %482 = vmatpush1.xpose.msra.mxu0 0.0
    %483 = vmatprep.mubr.f32.mxu0 0.0
    %v484 = vand.u32 %v32, 4294901760
    %485 = vmatmul.mubr.f32.gmra.mrb[0].mxu0 %v484
    %v486 = vpop.f32.mrb[0].mxu0
    %v487 = vadd.f32 %v396, %v486
    %v488 = vpop.f32.mrb[0].mxu0
    %489 = vmatprep.mubr.f32.mxu0 0.0
    %v490 = vand.u32 %v35, 4294901760
    %491 = vmatmul.mubr.f32.gmra.mrb[0].mxu0 %v490
    %v492 = vpop.f32.mrb[0].mxu0
    %v493 = vadd.f32 %v404, %v492
    %v494 = vpop.f32.mrb[0].mxu0
    %495 = vdwg.mxu0
    %496 = vmatprep.subr.mxu0 0.0
    %v497 = vand.u32 %v38, 4294901760
    %498 = vmatpush1.xpose.msra.mxu0 %v497
    %499 = vmatprep.subr.mxu0 0.0
    %v500 = vand.u32 %v41, 4294901760
    %501 = vmatpush1.xpose.msra.mxu0 %v500
    %502 = vmatprep.subr.mxu0 0.0
    %v503 = vand.u32 %v44, 4294901760
    %504 = vmatpush1.xpose.msra.mxu0 %v503
    %505 = vmatprep.subr.mxu0 0.0
    %v506 = vand.u32 %v47, 4294901760
    %507 = vmatpush1.xpose.msra.mxu0 %v506
    %508 = vmatprep.subr.mxu0 0.0
    %509 = vmatpush1.xpose.msra.mxu0 0.0
    %510 = vmatprep.subr.mxu0 0.0
    %511 = vmatpush1.xpose.msra.mxu0 0.0
    %512 = vmatprep.subr.mxu0 0.0
    %513 = vmatpush1.xpose.msra.mxu0 0.0
    %514 = vmatprep.subr.mxu0 0.0
    %515 = vmatpush1.xpose.msra.mxu0 0.0
    %516 = vmatprep.subr.mxu0 0.0
    %517 = vmatpush1.xpose.msra.mxu0 0.0
    %518 = vmatprep.subr.mxu0 0.0
    %519 = vmatpush1.xpose.msra.mxu0 0.0
    %520 = vmatprep.subr.mxu0 0.0
    %521 = vmatpush1.xpose.msra.mxu0 0.0
    %522 = vmatprep.subr.mxu0 0.0
    %523 = vmatpush1.xpose.msra.mxu0 0.0
    %524 = vmatprep.subr.mxu0 0.0
    %525 = vmatpush1.xpose.msra.mxu0 0.0
    %526 = vmatprep.subr.mxu0 0.0
    %527 = vmatpush1.xpose.msra.mxu0 0.0
    %528 = vmatprep.subr.mxu0 0.0
    %529 = vmatpush1.xpose.msra.mxu0 0.0
    %530 = vmatprep.subr.mxu0 0.0
    %531 = vmatpush1.xpose.msra.mxu0 0.0
    %532 = vmatprep.subr.mxu0 0.0
    %533 = vmatpush1.xpose.msra.mxu0 0.0
    %534 = vmatprep.subr.mxu0 0.0
    %535 = vmatpush1.xpose.msra.mxu0 0.0
    %536 = vmatprep.subr.mxu0 0.0
    %537 = vmatpush1.xpose.msra.mxu0 0.0
    %538 = vmatprep.subr.mxu0 0.0
    %539 = vmatpush1.xpose.msra.mxu0 0.0
    %540 = vmatprep.subr.mxu0 0.0
    %541 = vmatpush1.xpose.msra.mxu0 0.0
    %542 = vmatprep.subr.mxu0 0.0
    %543 = vmatpush1.xpose.msra.mxu0 0.0
    %544 = vmatprep.subr.mxu0 0.0
    %545 = vmatpush1.xpose.msra.mxu0 0.0
    %546 = vmatprep.subr.mxu0 0.0
    %547 = vmatpush1.xpose.msra.mxu0 0.0
    %548 = vmatprep.subr.mxu0 0.0
    %549 = vmatpush1.xpose.msra.mxu0 0.0
    %550 = vmatprep.subr.mxu0 0.0
    %551 = vmatpush1.xpose.msra.mxu0 0.0
    %552 = vmatprep.subr.mxu0 0.0
    %553 = vmatpush1.xpose.msra.mxu0 0.0
    %554 = vmatprep.subr.mxu0 0.0
    %555 = vmatpush1.xpose.msra.mxu0 0.0
    %556 = vmatprep.subr.mxu0 0.0
    %557 = vmatpush1.xpose.msra.mxu0 0.0
    %558 = vmatprep.subr.mxu0 0.0
    %559 = vmatpush1.xpose.msra.mxu0 0.0
    %560 = vmatprep.subr.mxu0 0.0
    %561 = vmatpush1.xpose.msra.mxu0 0.0
    %562 = vmatprep.subr.mxu0 0.0
    %563 = vmatpush1.xpose.msra.mxu0 0.0
    %564 = vmatprep.mubr.f32.mxu0 0.0
    %v565 = vand.u32 %v32, 4294901760
    %566 = vmatmul.mubr.f32.gmra.mrb[0].mxu0 %v565
    %v567 = vpop.f32.mrb[0].mxu0
    %v568 = vadd.f32 %v487, %v567
    %v569 = vpop.f32.mrb[0].mxu0
    %570 = vmatprep.mubr.f32.mxu0 0.0
    %v571 = vand.u32 %v35, 4294901760
    %572 = vmatmul.mubr.f32.gmra.mrb[0].mxu0 %v571
    %v573 = vpop.f32.mrb[0].mxu0
    %v574 = vadd.f32 %v493, %v573
    %v575 = vpop.f32.mrb[0].mxu0
    %576 = vdwg.mxu0
    %v577 = vld [vmem:[%s1] sm:$0xff]
    %v578 = vld [vmem:[%s1 + $0x8] sm:$0xf]
    %v580 = vsel %vm30, %v577, 0
    %v583 = vsel %vm30, %v578, 0
    %v586 = vsel %vm30, %v24, 0
    %v589 = vsel %vm30, %v25, 0
    %v592 = vsel %vm30, %v26, 0
    %v595 = vsel %vm30, %v27, 0
    %597 = vmatprep.subr.mxu0 0.0
    %v598 = vand.u32 %v586, 4294901760
    %599 = vmatpush1.xpose.msra.mxu0 %v598
    %600 = vmatprep.subr.mxu0 0.0
    %v601 = vand.u32 %v589, 4294901760
    %602 = vmatpush1.xpose.msra.mxu0 %v601
    %603 = vmatprep.subr.mxu0 0.0
    %v604 = vand.u32 %v592, 4294901760
    %605 = vmatpush1.xpose.msra.mxu0 %v604
    %606 = vmatprep.subr.mxu0 0.0
    %v607 = vand.u32 %v595, 4294901760
    %608 = vmatpush1.xpose.msra.mxu0 %v607
    %609 = vmatprep.subr.mxu0 0.0
    %610 = vmatpush1.xpose.msra.mxu0 0.0
    %611 = vmatprep.subr.mxu0 0.0
    %612 = vmatpush1.xpose.msra.mxu0 0.0
    %613 = vmatprep.subr.mxu0 0.0
    %614 = vmatpush1.xpose.msra.mxu0 0.0
    %615 = vmatprep.subr.mxu0 0.0
    %616 = vmatpush1.xpose.msra.mxu0 0.0
    %617 = vmatprep.subr.mxu0 0.0
    %618 = vmatpush1.xpose.msra.mxu0 0.0
    %619 = vmatprep.subr.mxu0 0.0
    %620 = vmatpush1.xpose.msra.mxu0 0.0
    %621 = vmatprep.subr.mxu0 0.0
    %622 = vmatpush1.xpose.msra.mxu0 0.0
    %623 = vmatprep.subr.mxu0 0.0
    %624 = vmatpush1.xpose.msra.mxu0 0.0
    %625 = vmatprep.subr.mxu0 0.0
    %626 = vmatpush1.xpose.msra.mxu0 0.0
    %627 = vmatprep.subr.mxu0 0.0
    %628 = vmatpush1.xpose.msra.mxu0 0.0
    %629 = vmatprep.subr.mxu0 0.0
    %630 = vmatpush1.xpose.msra.mxu0 0.0
    %631 = vmatprep.subr.mxu0 0.0
    %632 = vmatpush1.xpose.msra.mxu0 0.0
    %633 = vmatprep.subr.mxu0 0.0
    %634 = vmatpush1.xpose.msra.mxu0 0.0
    %635 = vmatprep.subr.mxu0 0.0
    %636 = vmatpush1.xpose.msra.mxu0 0.0
    %637 = vmatprep.subr.mxu0 0.0
    %638 = vmatpush1.xpose.msra.mxu0 0.0
    %639 = vmatprep.subr.mxu0 0.0
    %640 = vmatpush1.xpose.msra.mxu0 0.0
    %641 = vmatprep.subr.mxu0 0.0
    %642 = vmatpush1.xpose.msra.mxu0 0.0
    %643 = vmatprep.subr.mxu0 0.0
    %644 = vmatpush1.xpose.msra.mxu0 0.0
    %645 = vmatprep.subr.mxu0 0.0
    %646 = vmatpush1.xpose.msra.mxu0 0.0
    %647 = vmatprep.subr.mxu0 0.0
    %648 = vmatpush1.xpose.msra.mxu0 0.0
    %649 = vmatprep.subr.mxu0 0.0
    %650 = vmatpush1.xpose.msra.mxu0 0.0
    %651 = vmatprep.subr.mxu0 0.0
    %652 = vmatpush1.xpose.msra.mxu0 0.0
    %653 = vmatprep.subr.mxu0 0.0
    %654 = vmatpush1.xpose.msra.mxu0 0.0
    %655 = vmatprep.subr.mxu0 0.0
    %656 = vmatpush1.xpose.msra.mxu0 0.0
    %657 = vmatprep.subr.mxu0 0.0
    %658 = vmatpush1.xpose.msra.mxu0 0.0
    %659 = vmatprep.subr.mxu0 0.0
    %660 = vmatpush1.xpose.msra.mxu0 0.0
    %661 = vmatprep.subr.mxu0 0.0
    %662 = vmatpush1.xpose.msra.mxu0 0.0
    %663 = vmatprep.subr.mxu0 0.0
    %664 = vmatpush1.xpose.msra.mxu0 0.0
    %665 = vmatprep.mubr.f32.mxu0 0.0
    %v666 = vand.u32 %v580, 4294901760
    %v667 = vsub.f32 %v580, %v666
    %v668 = vand.u32 %v667, 4294901760
    %v669 = vsub.f32 %v667, %v668
    %v670 = vand.u32 %v669, 4294901760
    %671 = vmatmul.mubr.f32.gmra.mrb[0].mxu0 %v670
    %v672 = vpop.f32.mrb[0].mxu0
    %v673 = vadd.f32 0.0, %v672
    %v674 = vpop.f32.mrb[0].mxu0
    %675 = vmatprep.mubr.f32.mxu0 0.0
    %v676 = vand.u32 %v583, 4294901760
    %v677 = vsub.f32 %v583, %v676
    %v678 = vand.u32 %v677, 4294901760
    %v679 = vsub.f32 %v677, %v678
    %v680 = vand.u32 %v679, 4294901760
    %681 = vmatmul.mubr.f32.gmra.mrb[0].mxu0 %v680
    %v682 = vpop.f32.mrb[0].mxu0
    %v683 = vadd.f32 0.0, %v682
    %v684 = vpop.f32.mrb[0].mxu0
    %685 = vdwg.mxu0
    %686 = vmatprep.subr.mxu0 0.0
    %v687 = vand.u32 %v586, 4294901760
    %v688 = vsub.f32 %v586, %v687
    %v689 = vand.u32 %v688, 4294901760
    %v690 = vsub.f32 %v688, %v689
    %v691 = vand.u32 %v690, 4294901760
    %692 = vmatpush1.xpose.msra.mxu0 %v691
    %693 = vmatprep.subr.mxu0 0.0
    %v694 = vand.u32 %v589, 4294901760
    %v695 = vsub.f32 %v589, %v694
    %v696 = vand.u32 %v695, 4294901760
    %v697 = vsub.f32 %v695, %v696
    %v698 = vand.u32 %v697, 4294901760
    %699 = vmatpush1.xpose.msra.mxu0 %v698
    %700 = vmatprep.subr.mxu0 0.0
    %v701 = vand.u32 %v592, 4294901760
    %v702 = vsub.f32 %v592, %v701
    %v703 = vand.u32 %v702, 4294901760
    %v704 = vsub.f32 %v702, %v703
    %v705 = vand.u32 %v704, 4294901760
    %706 = vmatpush1.xpose.msra.mxu0 %v705
    %707 = vmatprep.subr.mxu0 0.0
    %v708 = vand.u32 %v595, 4294901760
    %v709 = vsub.f32 %v595, %v708
    %v710 = vand.u32 %v709, 4294901760
    %v711 = vsub.f32 %v709, %v710
    %v712 = vand.u32 %v711, 4294901760
    %713 = vmatpush1.xpose.msra.mxu0 %v712
    %714 = vmatprep.subr.mxu0 0.0
    %715 = vmatpush1.xpose.msra.mxu0 0.0
    %716 = vmatprep.subr.mxu0 0.0
    %717 = vmatpush1.xpose.msra.mxu0 0.0
    %718 = vmatprep.subr.mxu0 0.0
    %719 = vmatpush1.xpose.msra.mxu0 0.0
    %720 = vmatprep.subr.mxu0 0.0
    %721 = vmatpush1.xpose.msra.mxu0 0.0
    %722 = vmatprep.subr.mxu0 0.0
    %723 = vmatpush1.xpose.msra.mxu0 0.0
    %724 = vmatprep.subr.mxu0 0.0
    %725 = vmatpush1.xpose.msra.mxu0 0.0
    %726 = vmatprep.subr.mxu0 0.0
    %727 = vmatpush1.xpose.msra.mxu0 0.0
    %728 = vmatprep.subr.mxu0 0.0
    %729 = vmatpush1.xpose.msra.mxu0 0.0
    %730 = vmatprep.subr.mxu0 0.0
    %731 = vmatpush1.xpose.msra.mxu0 0.0
    %732 = vmatprep.subr.mxu0 0.0
    %733 = vmatpush1.xpose.msra.mxu0 0.0
    %734 = vmatprep.subr.mxu0 0.0
    %735 = vmatpush1.xpose.msra.mxu0 0.0
    %736 = vmatprep.subr.mxu0 0.0
    %737 = vmatpush1.xpose.msra.mxu0 0.0
    %738 = vmatprep.subr.mxu0 0.0
    %739 = vmatpush1.xpose.msra.mxu0 0.0
    %740 = vmatprep.subr.mxu0 0.0
    %741 = vmatpush1.xpose.msra.mxu0 0.0
    %742 = vmatprep.subr.mxu0 0.0
    %743 = vmatpush1.xpose.msra.mxu0 0.0
    %744 = vmatprep.subr.mxu0 0.0
    %745 = vmatpush1.xpose.msra.mxu0 0.0
    %746 = vmatprep.subr.mxu0 0.0
    %747 = vmatpush1.xpose.msra.mxu0 0.0
    %748 = vmatprep.subr.mxu0 0.0
    %749 = vmatpush1.xpose.msra.mxu0 0.0
    %750 = vmatprep.subr.mxu0 0.0
    %751 = vmatpush1.xpose.msra.mxu0 0.0
    %752 = vmatprep.subr.mxu0 0.0
    %753 = vmatpush1.xpose.msra.mxu0 0.0
    %754 = vmatprep.subr.mxu0 0.0
    %755 = vmatpush1.xpose.msra.mxu0 0.0
    %756 = vmatprep.subr.mxu0 0.0
    %757 = vmatpush1.xpose.msra.mxu0 0.0
    %758 = vmatprep.subr.mxu0 0.0
    %759 = vmatpush1.xpose.msra.mxu0 0.0
    %760 = vmatprep.subr.mxu0 0.0
    %761 = vmatpush1.xpose.msra.mxu0 0.0
    %762 = vmatprep.subr.mxu0 0.0
    %763 = vmatpush1.xpose.msra.mxu0 0.0
    %764 = vmatprep.subr.mxu0 0.0
    %765 = vmatpush1.xpose.msra.mxu0 0.0
    %766 = vmatprep.subr.mxu0 0.0
    %767 = vmatpush1.xpose.msra.mxu0 0.0
    %768 = vmatprep.subr.mxu0 0.0
    %769 = vmatpush1.xpose.msra.mxu0 0.0
    %770 = vmatprep.mubr.f32.mxu0 0.0
    %v771 = vand.u32 %v580, 4294901760
    %772 = vmatmul.mubr.f32.gmra.mrb[0].mxu0 %v771
    %v773 = vpop.f32.mrb[0].mxu0
    %v774 = vadd.f32 %v673, %v773
    %v775 = vpop.f32.mrb[0].mxu0
    %776 = vmatprep.mubr.f32.mxu0 0.0
    %v777 = vand.u32 %v583, 4294901760
    %778 = vmatmul.mubr.f32.gmra.mrb[0].mxu0 %v777
    %v779 = vpop.f32.mrb[0].mxu0
    %v780 = vadd.f32 %v683, %v779
    %v781 = vpop.f32.mrb[0].mxu0
    %782 = vdwg.mxu0
    %783 = vmatprep.subr.mxu0 0.0
    %v784 = vand.u32 %v586, 4294901760
    %v785 = vsub.f32 %v586, %v784
    %786 = vmatpush1.xpose.msra.mxu0 %v785
    %787 = vmatprep.subr.mxu0 0.0
    %v788 = vand.u32 %v589, 4294901760
    %v789 = vsub.f32 %v589, %v788
    %790 = vmatpush1.xpose.msra.mxu0 %v789
    %791 = vmatprep.subr.mxu0 0.0
    %v792 = vand.u32 %v592, 4294901760
    %v793 = vsub.f32 %v592, %v792
    %794 = vmatpush1.xpose.msra.mxu0 %v793
    %795 = vmatprep.subr.mxu0 0.0
    %v796 = vand.u32 %v595, 4294901760
    %v797 = vsub.f32 %v595, %v796
    %798 = vmatpush1.xpose.msra.mxu0 %v797
    %799 = vmatprep.subr.mxu0 0.0
    %800 = vmatpush1.xpose.msra.mxu0 0.0
    %801 = vmatprep.subr.mxu0 0.0
    %802 = vmatpush1.xpose.msra.mxu0 0.0
    %803 = vmatprep.subr.mxu0 0.0
    %804 = vmatpush1.xpose.msra.mxu0 0.0
    %805 = vmatprep.subr.mxu0 0.0
    %806 = vmatpush1.xpose.msra.mxu0 0.0
    %807 = vmatprep.subr.mxu0 0.0
    %808 = vmatpush1.xpose.msra.mxu0 0.0
    %809 = vmatprep.subr.mxu0 0.0
    %810 = vmatpush1.xpose.msra.mxu0 0.0
    %811 = vmatprep.subr.mxu0 0.0
    %812 = vmatpush1.xpose.msra.mxu0 0.0
    %813 = vmatprep.subr.mxu0 0.0
    %814 = vmatpush1.xpose.msra.mxu0 0.0
    %815 = vmatprep.subr.mxu0 0.0
    %816 = vmatpush1.xpose.msra.mxu0 0.0
    %817 = vmatprep.subr.mxu0 0.0
    %818 = vmatpush1.xpose.msra.mxu0 0.0
    %819 = vmatprep.subr.mxu0 0.0
    %820 = vmatpush1.xpose.msra.mxu0 0.0
    %821 = vmatprep.subr.mxu0 0.0
    %822 = vmatpush1.xpose.msra.mxu0 0.0
    %823 = vmatprep.subr.mxu0 0.0
    %824 = vmatpush1.xpose.msra.mxu0 0.0
    %825 = vmatprep.subr.mxu0 0.0
    %826 = vmatpush1.xpose.msra.mxu0 0.0
    %827 = vmatprep.subr.mxu0 0.0
    %828 = vmatpush1.xpose.msra.mxu0 0.0
    %829 = vmatprep.subr.mxu0 0.0
    %830 = vmatpush1.xpose.msra.mxu0 0.0
    %831 = vmatprep.subr.mxu0 0.0
    %832 = vmatpush1.xpose.msra.mxu0 0.0
    %833 = vmatprep.subr.mxu0 0.0
    %834 = vmatpush1.xpose.msra.mxu0 0.0
    %835 = vmatprep.subr.mxu0 0.0
    %836 = vmatpush1.xpose.msra.mxu0 0.0
    %837 = vmatprep.subr.mxu0 0.0
    %838 = vmatpush1.xpose.msra.mxu0 0.0
    %839 = vmatprep.subr.mxu0 0.0
    %840 = vmatpush1.xpose.msra.mxu0 0.0
    %841 = vmatprep.subr.mxu0 0.0
    %842 = vmatpush1.xpose.msra.mxu0 0.0
    %843 = vmatprep.subr.mxu0 0.0
    %844 = vmatpush1.xpose.msra.mxu0 0.0
    %845 = vmatprep.subr.mxu0 0.0
    %846 = vmatpush1.xpose.msra.mxu0 0.0
    %847 = vmatprep.subr.mxu0 0.0
    %848 = vmatpush1.xpose.msra.mxu0 0.0
    %849 = vmatprep.subr.mxu0 0.0
    %850 = vmatpush1.xpose.msra.mxu0 0.0
    %851 = vmatprep.subr.mxu0 0.0
    %852 = vmatpush1.xpose.msra.mxu0 0.0
    %853 = vmatprep.subr.mxu0 0.0
    %854 = vmatpush1.xpose.msra.mxu0 0.0
    %855 = vmatprep.mubr.f32.mxu0 0.0
    %v856 = vand.u32 %v580, 4294901760
    %v857 = vsub.f32 %v580, %v856
    %858 = vmatmul.mubr.f32.gmra.mrb[0].mxu0 %v857
    %v859 = vpop.f32.mrb[0].mxu0
    %v860 = vadd.f32 %v774, %v859
    %v861 = vpop.f32.mrb[0].mxu0
    %862 = vmatprep.mubr.f32.mxu0 0.0
    %v863 = vand.u32 %v583, 4294901760
    %v864 = vsub.f32 %v583, %v863
    %865 = vmatmul.mubr.f32.gmra.mrb[0].mxu0 %v864
    %v866 = vpop.f32.mrb[0].mxu0
    %v867 = vadd.f32 %v780, %v866
    %v868 = vpop.f32.mrb[0].mxu0
    %869 = vdwg.mxu0
    %870 = vmatprep.subr.mxu0 0.0
    %v871 = vand.u32 %v586, 4294901760
    %872 = vmatpush1.xpose.msra.mxu0 %v871
    %873 = vmatprep.subr.mxu0 0.0
    %v874 = vand.u32 %v589, 4294901760
    %875 = vmatpush1.xpose.msra.mxu0 %v874
    %876 = vmatprep.subr.mxu0 0.0
    %v877 = vand.u32 %v592, 4294901760
    %878 = vmatpush1.xpose.msra.mxu0 %v877
    %879 = vmatprep.subr.mxu0 0.0
    %v880 = vand.u32 %v595, 4294901760
    %881 = vmatpush1.xpose.msra.mxu0 %v880
    %882 = vmatprep.subr.mxu0 0.0
    %883 = vmatpush1.xpose.msra.mxu0 0.0
    %884 = vmatprep.subr.mxu0 0.0
    %885 = vmatpush1.xpose.msra.mxu0 0.0
    %886 = vmatprep.subr.mxu0 0.0
    %887 = vmatpush1.xpose.msra.mxu0 0.0
    %888 = vmatprep.subr.mxu0 0.0
    %889 = vmatpush1.xpose.msra.mxu0 0.0
    %890 = vmatprep.subr.mxu0 0.0
    %891 = vmatpush1.xpose.msra.mxu0 0.0
    %892 = vmatprep.subr.mxu0 0.0
    %893 = vmatpush1.xpose.msra.mxu0 0.0
    %894 = vmatprep.subr.mxu0 0.0
    %895 = vmatpush1.xpose.msra.mxu0 0.0
    %896 = vmatprep.subr.mxu0 0.0
    %897 = vmatpush1.xpose.msra.mxu0 0.0
    %898 = vmatprep.subr.mxu0 0.0
    %899 = vmatpush1.xpose.msra.mxu0 0.0
    %900 = vmatprep.subr.mxu0 0.0
    %901 = vmatpush1.xpose.msra.mxu0 0.0
    %902 = vmatprep.subr.mxu0 0.0
    %903 = vmatpush1.xpose.msra.mxu0 0.0
    %904 = vmatprep.subr.mxu0 0.0
    %905 = vmatpush1.xpose.msra.mxu0 0.0
    %906 = vmatprep.subr.mxu0 0.0
    %907 = vmatpush1.xpose.msra.mxu0 0.0
    %908 = vmatprep.subr.mxu0 0.0
    %909 = vmatpush1.xpose.msra.mxu0 0.0
    %910 = vmatprep.subr.mxu0 0.0
    %911 = vmatpush1.xpose.msra.mxu0 0.0
    %912 = vmatprep.subr.mxu0 0.0
    %913 = vmatpush1.xpose.msra.mxu0 0.0
    %914 = vmatprep.subr.mxu0 0.0
    %915 = vmatpush1.xpose.msra.mxu0 0.0
    %916 = vmatprep.subr.mxu0 0.0
    %917 = vmatpush1.xpose.msra.mxu0 0.0
    %918 = vmatprep.subr.mxu0 0.0
    %919 = vmatpush1.xpose.msra.mxu0 0.0
    %920 = vmatprep.subr.mxu0 0.0
    %921 = vmatpush1.xpose.msra.mxu0 0.0
    %922 = vmatprep.subr.mxu0 0.0
    %923 = vmatpush1.xpose.msra.mxu0 0.0
    %924 = vmatprep.subr.mxu0 0.0
    %925 = vmatpush1.xpose.msra.mxu0 0.0
    %926 = vmatprep.subr.mxu0 0.0
    %927 = vmatpush1.xpose.msra.mxu0 0.0
    %928 = vmatprep.subr.mxu0 0.0
    %929 = vmatpush1.xpose.msra.mxu0 0.0
    %930 = vmatprep.subr.mxu0 0.0
    %931 = vmatpush1.xpose.msra.mxu0 0.0
    %932 = vmatprep.subr.mxu0 0.0
    %933 = vmatpush1.xpose.msra.mxu0 0.0
    %934 = vmatprep.subr.mxu0 0.0
    %935 = vmatpush1.xpose.msra.mxu0 0.0
    %936 = vmatprep.subr.mxu0 0.0
    %937 = vmatpush1.xpose.msra.mxu0 0.0
    %938 = vmatprep.mubr.f32.mxu0 0.0
    %v939 = vand.u32 %v580, 4294901760
    %v940 = vsub.f32 %v580, %v939
    %v941 = vand.u32 %v940, 4294901760
    %942 = vmatmul.mubr.f32.gmra.mrb[0].mxu0 %v941
    %v943 = vpop.f32.mrb[0].mxu0
    %v944 = vadd.f32 %v860, %v943
    %v945 = vpop.f32.mrb[0].mxu0
    %946 = vmatprep.mubr.f32.mxu0 0.0
    %v947 = vand.u32 %v583, 4294901760
    %v948 = vsub.f32 %v583, %v947
    %v949 = vand.u32 %v948, 4294901760
    %950 = vmatmul.mubr.f32.gmra.mrb[0].mxu0 %v949
    %v951 = vpop.f32.mrb[0].mxu0
    %v952 = vadd.f32 %v867, %v951
    %v953 = vpop.f32.mrb[0].mxu0
    %954 = vdwg.mxu0
    %955 = vmatprep.subr.mxu0 0.0
    %v956 = vand.u32 %v586, 4294901760
    %v957 = vsub.f32 %v586, %v956
    %v958 = vand.u32 %v957, 4294901760
    %959 = vmatpush1.xpose.msra.mxu0 %v958
    %960 = vmatprep.subr.mxu0 0.0
    %v961 = vand.u32 %v589, 4294901760
    %v962 = vsub.f32 %v589, %v961
    %v963 = vand.u32 %v962, 4294901760
    %964 = vmatpush1.xpose.msra.mxu0 %v963
    %965 = vmatprep.subr.mxu0 0.0
    %v966 = vand.u32 %v592, 4294901760
    %v967 = vsub.f32 %v592, %v966
    %v968 = vand.u32 %v967, 4294901760
    %969 = vmatpush1.xpose.msra.mxu0 %v968
    %970 = vmatprep.subr.mxu0 0.0
    %v971 = vand.u32 %v595, 4294901760
    %v972 = vsub.f32 %v595, %v971
    %v973 = vand.u32 %v972, 4294901760
    %974 = vmatpush1.xpose.msra.mxu0 %v973
    %975 = vmatprep.subr.mxu0 0.0
    %976 = vmatpush1.xpose.msra.mxu0 0.0
    %977 = vmatprep.subr.mxu0 0.0
    %978 = vmatpush1.xpose.msra.mxu0 0.0
    %979 = vmatprep.subr.mxu0 0.0
    %980 = vmatpush1.xpose.msra.mxu0 0.0
    %981 = vmatprep.subr.mxu0 0.0
    %982 = vmatpush1.xpose.msra.mxu0 0.0
    %983 = vmatprep.subr.mxu0 0.0
    %984 = vmatpush1.xpose.msra.mxu0 0.0
    %985 = vmatprep.subr.mxu0 0.0
    %986 = vmatpush1.xpose.msra.mxu0 0.0
    %987 = vmatprep.subr.mxu0 0.0
    %988 = vmatpush1.xpose.msra.mxu0 0.0
    %989 = vmatprep.subr.mxu0 0.0
    %990 = vmatpush1.xpose.msra.mxu0 0.0
    %991 = vmatprep.subr.mxu0 0.0
    %992 = vmatpush1.xpose.msra.mxu0 0.0
    %993 = vmatprep.subr.mxu0 0.0
    %994 = vmatpush1.xpose.msra.mxu0 0.0
    %995 = vmatprep.subr.mxu0 0.0
    %996 = vmatpush1.xpose.msra.mxu0 0.0
    %997 = vmatprep.subr.mxu0 0.0
    %998 = vmatpush1.xpose.msra.mxu0 0.0
    %999 = vmatprep.subr.mxu0 0.0
    %1000 = vmatpush1.xpose.msra.mxu0 0.0
    %1001 = vmatprep.subr.mxu0 0.0
    %1002 = vmatpush1.xpose.msra.mxu0 0.0
    %1003 = vmatprep.subr.mxu0 0.0
    %1004 = vmatpush1.xpose.msra.mxu0 0.0
    %1005 = vmatprep.subr.mxu0 0.0
    %1006 = vmatpush1.xpose.msra.mxu0 0.0
    %1007 = vmatprep.subr.mxu0 0.0
    %1008 = vmatpush1.xpose.msra.mxu0 0.0
    %1009 = vmatprep.subr.mxu0 0.0
    %1010 = vmatpush1.xpose.msra.mxu0 0.0
    %1011 = vmatprep.subr.mxu0 0.0
    %1012 = vmatpush1.xpose.msra.mxu0 0.0
    %1013 = vmatprep.subr.mxu0 0.0
    %1014 = vmatpush1.xpose.msra.mxu0 0.0
    %1015 = vmatprep.subr.mxu0 0.0
    %1016 = vmatpush1.xpose.msra.mxu0 0.0
    %1017 = vmatprep.subr.mxu0 0.0
    %1018 = vmatpush1.xpose.msra.mxu0 0.0
    %1019 = vmatprep.subr.mxu0 0.0
    %1020 = vmatpush1.xpose.msra.mxu0 0.0
    %1021 = vmatprep.subr.mxu0 0.0
    %1022 = vmatpush1.xpose.msra.mxu0 0.0
    %1023 = vmatprep.subr.mxu0 0.0
    %1024 = vmatpush1.xpose.msra.mxu0 0.0
    %1025 = vmatprep.subr.mxu0 0.0
    %1026 = vmatpush1.xpose.msra.mxu0 0.0
    %1027 = vmatprep.subr.mxu0 0.0
    %1028 = vmatpush1.xpose.msra.mxu0 0.0
    %1029 = vmatprep.subr.mxu0 0.0
    %1030 = vmatpush1.xpose.msra.mxu0 0.0
    %1031 = vmatprep.mubr.f32.mxu0 0.0
    %v1032 = vand.u32 %v580, 4294901760
    %1033 = vmatmul.mubr.f32.gmra.mrb[0].mxu0 %v1032
    %v1034 = vpop.f32.mrb[0].mxu0
    %v1035 = vadd.f32 %v944, %v1034
    %v1036 = vpop.f32.mrb[0].mxu0
    %1037 = vmatprep.mubr.f32.mxu0 0.0
    %v1038 = vand.u32 %v583, 4294901760
    %1039 = vmatmul.mubr.f32.gmra.mrb[0].mxu0 %v1038
    %v1040 = vpop.f32.mrb[0].mxu0
    %v1041 = vadd.f32 %v952, %v1040
    %v1042 = vpop.f32.mrb[0].mxu0
    %1043 = vdwg.mxu0
    %1044 = vmatprep.subr.mxu0 0.0
    %v1045 = vand.u32 %v586, 4294901760
    %1046 = vmatpush1.xpose.msra.mxu0 %v1045
    %1047 = vmatprep.subr.mxu0 0.0
    %v1048 = vand.u32 %v589, 4294901760
    %1049 = vmatpush1.xpose.msra.mxu0 %v1048
    %1050 = vmatprep.subr.mxu0 0.0
    %v1051 = vand.u32 %v592, 4294901760
    %1052 = vmatpush1.xpose.msra.mxu0 %v1051
    %1053 = vmatprep.subr.mxu0 0.0
    %v1054 = vand.u32 %v595, 4294901760
    %1055 = vmatpush1.xpose.msra.mxu0 %v1054
    %1056 = vmatprep.subr.mxu0 0.0
    %1057 = vmatpush1.xpose.msra.mxu0 0.0
    %1058 = vmatprep.subr.mxu0 0.0
    %1059 = vmatpush1.xpose.msra.mxu0 0.0
    %1060 = vmatprep.subr.mxu0 0.0
    %1061 = vmatpush1.xpose.msra.mxu0 0.0
    %1062 = vmatprep.subr.mxu0 0.0
    %1063 = vmatpush1.xpose.msra.mxu0 0.0
    %1064 = vmatprep.subr.mxu0 0.0
    %1065 = vmatpush1.xpose.msra.mxu0 0.0
    %1066 = vmatprep.subr.mxu0 0.0
    %1067 = vmatpush1.xpose.msra.mxu0 0.0
    %1068 = vmatprep.subr.mxu0 0.0
    %1069 = vmatpush1.xpose.msra.mxu0 0.0
    %1070 = vmatprep.subr.mxu0 0.0
    %1071 = vmatpush1.xpose.msra.mxu0 0.0
    %1072 = vmatprep.subr.mxu0 0.0
    %1073 = vmatpush1.xpose.msra.mxu0 0.0
    %1074 = vmatprep.subr.mxu0 0.0
    %1075 = vmatpush1.xpose.msra.mxu0 0.0
    %1076 = vmatprep.subr.mxu0 0.0
    %1077 = vmatpush1.xpose.msra.mxu0 0.0
    %1078 = vmatprep.subr.mxu0 0.0
    %1079 = vmatpush1.xpose.msra.mxu0 0.0
    %1080 = vmatprep.subr.mxu0 0.0
    %1081 = vmatpush1.xpose.msra.mxu0 0.0
    %1082 = vmatprep.subr.mxu0 0.0
    %1083 = vmatpush1.xpose.msra.mxu0 0.0
    %1084 = vmatprep.subr.mxu0 0.0
    %1085 = vmatpush1.xpose.msra.mxu0 0.0
    %1086 = vmatprep.subr.mxu0 0.0
    %1087 = vmatpush1.xpose.msra.mxu0 0.0
    %1088 = vmatprep.subr.mxu0 0.0
    %1089 = vmatpush1.xpose.msra.mxu0 0.0
    %1090 = vmatprep.subr.mxu0 0.0
    %1091 = vmatpush1.xpose.msra.mxu0 0.0
    %1092 = vmatprep.subr.mxu0 0.0
    %1093 = vmatpush1.xpose.msra.mxu0 0.0
    %1094 = vmatprep.subr.mxu0 0.0
    %1095 = vmatpush1.xpose.msra.mxu0 0.0
    %1096 = vmatprep.subr.mxu0 0.0
    %1097 = vmatpush1.xpose.msra.mxu0 0.0
    %1098 = vmatprep.subr.mxu0 0.0
    %1099 = vmatpush1.xpose.msra.mxu0 0.0
    %1100 = vmatprep.subr.mxu0 0.0
    %1101 = vmatpush1.xpose.msra.mxu0 0.0
    %1102 = vmatprep.subr.mxu0 0.0
    %1103 = vmatpush1.xpose.msra.mxu0 0.0
    %1104 = vmatprep.subr.mxu0 0.0
    %1105 = vmatpush1.xpose.msra.mxu0 0.0
    %1106 = vmatprep.subr.mxu0 0.0
    %1107 = vmatpush1.xpose.msra.mxu0 0.0
    %1108 = vmatprep.subr.mxu0 0.0
    %1109 = vmatpush1.xpose.msra.mxu0 0.0
    %1110 = vmatprep.subr.mxu0 0.0
    %1111 = vmatpush1.xpose.msra.mxu0 0.0
    %1112 = vmatprep.mubr.f32.mxu0 0.0
    %v1113 = vand.u32 %v580, 4294901760
    %1114 = vmatmul.mubr.f32.gmra.mrb[0].mxu0 %v1113
    %v1115 = vpop.f32.mrb[0].mxu0
    %v1116 = vadd.f32 %v1035, %v1115
    %v1117 = vpop.f32.mrb[0].mxu0
    %1118 = vmatprep.mubr.f32.mxu0 0.0
    %v1119 = vand.u32 %v583, 4294901760
    %1120 = vmatmul.mubr.f32.gmra.mrb[0].mxu0 %v1119
    %v1121 = vpop.f32.mrb[0].mxu0
    %v1122 = vadd.f32 %v1041, %v1121
    %v1123 = vpop.f32.mrb[0].mxu0
    %1124 = vdwg.mxu0
    %v1125 = vand.u32 2147483647, %v568
    %vm1126 = vcmp.le.f32.partialorder %v1125, 0.7853982
    %vm1127 = vcmp.lt.s32.totalorder %v568, 0
    %v1128 = vand.u32 %v568, 2139095040
    %v1129 = vshrl.u32 %v1128, 23
    %v1130 = vsub.s32 %v1129, 127
    %v1131 = vand.u32 2147483647, %v568
    %v1132 = vand.u32 %v1131, 8388607
    %v1133 = vor.u32 %v1132, 8388608
    %v1134 = vsub.s32 0, %v1133
    %v1135 = vadd.s32 %v1130, 1
    %vm1136 = vcmp.gt.s32.totalorder %v1135, 0
    %v1137 = vsel %vm1136, %v1135, 0
    %v1138 = vshrl.u32 %v1137, 5
    %v1139 = vand.u32 %v1137, 31
    %v1140 = vsub.s32 32, %v1139
    %v1141 = vshrl.u32 683565275, %v1140
    %v1142 = vshll.u32 683565275, %v1139
    %v1143 = vshrl.u32 2475754826, %v1140
    %v1144 = vor.u32 %v1142, %v1143
    %v1145 = vshll.u32 2475754826, %v1139
    %v1146 = vshrl.u32 2131351028, %v1140
    %v1147 = vor.u32 %v1145, %v1146
    %v1148 = vshll.u32 2131351028, %v1139
    %v1149 = vshrl.u32 2102212464, %v1140
    %v1150 = vor.u32 %v1148, %v1149
    %v1151 = vshll.u32 2102212464, %v1139
    %v1152 = vshrl.u32 920167782, %v1140
    %v1153 = vor.u32 %v1151, %v1152
    %v1154 = vshll.u32 920167782, %v1139
    %v1155 = vshrl.u32 1326507024, %v1140
    %v1156 = vor.u32 %v1154, %v1155
    %vm1157 = vcmp.lt.s32.totalorder %v1138, 1
    %vm1158 = vcmp.lt.s32.totalorder %v1138, 2
    %vm1159 = vcmp.lt.s32.totalorder %v1138, 3
    %vm1160 = vcmp.lt.s32.totalorder %v1138, 4
    %v1161 = vsel %vm1157, %v1141, %v1144
    %v1162 = vsel %vm1160, %v1150, 2102212464
    %v1163 = vsel %vm1159, %v1147, %v1162
    %v1164 = vsel %vm1158, %v1161, %v1163
    %v1165 = vsel %vm1157, %v1144, %v1147
    %v1166 = vsel %vm1160, %v1153, 920167782
    %v1167 = vsel %vm1159, %v1150, %v1166
    %v1168 = vsel %vm1158, %v1165, %v1167
    %v1169 = vsel %vm1157, %v1147, %v1150
    %v1170 = vsel %vm1160, %v1156, 1326507024
    %v1171 = vsel %vm1159, %v1153, %v1170
    %v1172 = vsel %vm1158, %v1169, %v1171
    %v1173 = vshll.u32 %v1133, 8
    %v1174 = vmul.u32.u64.compose %v1173, %v1172
    %v1175 = vextract.low.u32 %v1174
    %v1176 = vextract.high.u32 %v1174
    %v1177 = vmul.u32.u64.compose %v1173, %v1168
    %v1178 = vextract.low.u32 %v1177
    %v1179 = vextract.high.u32 %v1177
    %v1180 = vmul.u32 %v1173, %v1164
    %v1181 = vadd.s32 %v1176, %v1178
    %vm1182 = vc.u32 %v1176, %v1178
    %v1183 = vadd.s32 %v1179, 1
    %v1184 = vsel %vm1182, %v1183, %v1179
    %v1185 = vadd.s32 %v1180, %v1184
    %v1186 = vadd.s32 %v1185, 536870912
    %v1187 = vshrl.u32 %v1186, 30
    %v1188 = vshll.u32 %v1187, 30
    %v1189 = vsub.s32 %v1185, %v1188
    %vm1190 = vcmp.lt.s32.totalorder %v1189, 0
    %v1191 = vsub.s32 0, %v1189
    %v1192 = vsel %vm1190, %v1191, %v1189
    %v1193 = vclz %v1192
    %v1194 = vsub.s32 %v1193, 2
    %vm1195 = vcmp.gt.s32.totalorder 0, %v1194
    %v1196 = vsel %vm1195, 0, %v1194
    %v1197 = vsub.s32 32, %v1196
    %v1198 = vshll.u32 %v1189, %v1196
    %v1199 = vshrl.u32 %v1181, %v1197
    %v1200 = vor.u32 %v1198, %v1199
    %v1201 = vsub.s32 4294967266, %v1196
    %v1202 = vadd.s32 %v1201, 127
    %v1203 = vshll.u32 %v1202, 23
    %v1204 = vor.u32 4788187, %v1203
    %v1205 = vand.u32 2147483647, %v1204
    %v1207 = vcvt.s32.f32 %v1200
    %v1208 = vmul.f32 %v1207, %v1205
    %v1209 = vxor.u32 %v1208, 2147483648
    %v1210 = vsel %vm1127, %v1209, %v1208
    %v1211 = vsub.s32 4, %v1187
    %v1212 = vsel %vm1127, %v1211, %v1187
    %v1213 = vsel %vm1126, %v568, %v1210
    %v1214 = vsel %vm1126, 0, %v1212
    %v1215 = vcosq.f32.pop %v1213
    %v1216 = vsinq.f32.pop %v1213
    %vm1217 = vweird.f32 %v568
    %v1218 = vadd.s32 %v1214, 3
    %v1219 = vand.u32 %v1218, 3
    %vm1220 = vcmp.lt.s32.totalorder %v1219, 2
    %vm1221 = vcmp.eq.s32.totalorder %v1219, 0
    %v1222 = vxor.u32 %v1216, 2147483648
    %v1223 = vsel %vm1221, %v1215, %v1222
    %vm1224 = vcmp.eq.s32.totalorder %v1219, 2
    %v1225 = vxor.u32 %v1215, 2147483648
    %v1226 = vsel %vm1224, %v1225, %v1216
    %v1227 = vsel %vm1220, %v1223, %v1226
    %v1228 = vsel %vm1217, nan, %v1227
    %v1229 = vand.u32 2147483647, %v574
    %vm1230 = vcmp.le.f32.partialorder %v1229, 0.7853982
    %vm1231 = vcmp.lt.s32.totalorder %v574, 0
    %v1232 = vand.u32 %v574, 2139095040
    %v1233 = vshrl.u32 %v1232, 23
    %v1234 = vsub.s32 %v1233, 127
    %v1235 = vand.u32 2147483647, %v574
    %v1236 = vand.u32 %v1235, 8388607
    %v1237 = vor.u32 %v1236, 8388608
    %v1238 = vsub.s32 0, %v1237
    %v1239 = vadd.s32 %v1234, 1
    %vm1240 = vcmp.gt.s32.totalorder %v1239, 0
    %v1241 = vsel %vm1240, %v1239, 0
    %v1242 = vshrl.u32 %v1241, 5
    %v1243 = vand.u32 %v1241, 31
    %v1244 = vsub.s32 32, %v1243
    %v1245 = vshrl.u32 683565275, %v1244
    %v1246 = vshll.u32 683565275, %v1243
    %v1247 = vshrl.u32 2475754826, %v1244
    %v1248 = vor.u32 %v1246, %v1247
    %v1249 = vshll.u32 2475754826, %v1243
    %v1250 = vshrl.u32 2131351028, %v1244
    %v1251 = vor.u32 %v1249, %v1250
    %v1252 = vshll.u32 2131351028, %v1243
    %v1253 = vshrl.u32 2102212464, %v1244
    %v1254 = vor.u32 %v1252, %v1253
    %v1255 = vshll.u32 2102212464, %v1243
    %v1256 = vshrl.u32 920167782, %v1244
    %v1257 = vor.u32 %v1255, %v1256
    %v1258 = vshll.u32 920167782, %v1243
    %v1259 = vshrl.u32 1326507024, %v1244
    %v1260 = vor.u32 %v1258, %v1259
    %vm1261 = vcmp.lt.s32.totalorder %v1242, 1
    %vm1262 = vcmp.lt.s32.totalorder %v1242, 2
    %vm1263 = vcmp.lt.s32.totalorder %v1242, 3
    %vm1264 = vcmp.lt.s32.totalorder %v1242, 4
    %v1265 = vsel %vm1261, %v1245, %v1248
    %v1266 = vsel %vm1264, %v1254, 2102212464
    %v1267 = vsel %vm1263, %v1251, %v1266
    %v1268 = vsel %vm1262, %v1265, %v1267
    %v1269 = vsel %vm1261, %v1248, %v1251
    %v1270 = vsel %vm1264, %v1257, 920167782
    %v1271 = vsel %vm1263, %v1254, %v1270
    %v1272 = vsel %vm1262, %v1269, %v1271
    %v1273 = vsel %vm1261, %v1251, %v1254
    %v1274 = vsel %vm1264, %v1260, 1326507024
    %v1275 = vsel %vm1263, %v1257, %v1274
    %v1276 = vsel %vm1262, %v1273, %v1275
    %v1277 = vshll.u32 %v1237, 8
    %v1278 = vmul.u32.u64.compose %v1277, %v1276
    %v1279 = vextract.low.u32 %v1278
    %v1280 = vextract.high.u32 %v1278
    %v1281 = vmul.u32.u64.compose %v1277, %v1272
    %v1282 = vextract.low.u32 %v1281
    %v1283 = vextract.high.u32 %v1281
    %v1284 = vmul.u32 %v1277, %v1268
    %v1285 = vadd.s32 %v1280, %v1282
    %vm1286 = vc.u32 %v1280, %v1282
    %v1287 = vadd.s32 %v1283, 1
    %v1288 = vsel %vm1286, %v1287, %v1283
    %v1289 = vadd.s32 %v1284, %v1288
    %v1290 = vadd.s32 %v1289, 536870912
    %v1291 = vshrl.u32 %v1290, 30
    %v1292 = vshll.u32 %v1291, 30
    %v1293 = vsub.s32 %v1289, %v1292
    %vm1294 = vcmp.lt.s32.totalorder %v1293, 0
    %v1295 = vsub.s32 0, %v1293
    %v1296 = vsel %vm1294, %v1295, %v1293
    %v1297 = vclz %v1296
    %v1298 = vsub.s32 %v1297, 2
    %vm1299 = vcmp.gt.s32.totalorder 0, %v1298
    %v1300 = vsel %vm1299, 0, %v1298
    %v1301 = vsub.s32 32, %v1300
    %v1302 = vshll.u32 %v1293, %v1300
    %v1303 = vshrl.u32 %v1285, %v1301
    %v1304 = vor.u32 %v1302, %v1303
    %v1305 = vsub.s32 4294967266, %v1300
    %v1306 = vadd.s32 %v1305, 127
    %v1307 = vshll.u32 %v1306, 23
    %v1308 = vor.u32 4788187, %v1307
    %v1309 = vand.u32 2147483647, %v1308
    %v1311 = vcvt.s32.f32 %v1304
    %v1312 = vmul.f32 %v1311, %v1309
    %v1313 = vxor.u32 %v1312, 2147483648
    %v1314 = vsel %vm1231, %v1313, %v1312
    %v1315 = vsub.s32 4, %v1291
    %v1316 = vsel %vm1231, %v1315, %v1291
    %v1317 = vsel %vm1230, %v574, %v1314
    %v1318 = vsel %vm1230, 0, %v1316
    %v1319 = vcosq.f32.pop %v1317
    %v1320 = vsinq.f32.pop %v1317
    %vm1321 = vweird.f32 %v574
    %v1322 = vadd.s32 %v1318, 3
    %v1323 = vand.u32 %v1322, 3
    %vm1324 = vcmp.lt.s32.totalorder %v1323, 2
    %vm1325 = vcmp.eq.s32.totalorder %v1323, 0
    %v1326 = vxor.u32 %v1320, 2147483648
    %v1327 = vsel %vm1325, %v1319, %v1326
    %vm1328 = vcmp.eq.s32.totalorder %v1323, 2
    %v1329 = vxor.u32 %v1319, 2147483648
    %v1330 = vsel %vm1328, %v1329, %v1320
    %v1331 = vsel %vm1324, %v1327, %v1330
    %v1332 = vsel %vm1321, nan, %v1331
    %v1333 = vand.u32 2147483647, %v568
    %vm1334 = vcmp.le.f32.partialorder %v1333, 0.7853982
    %vm1335 = vcmp.lt.s32.totalorder %v568, 0
    %v1336 = vand.u32 %v568, 2139095040
    %v1337 = vshrl.u32 %v1336, 23
    %v1338 = vsub.s32 %v1337, 127
    %v1339 = vand.u32 2147483647, %v568
    %v1340 = vand.u32 %v1339, 8388607
    %v1341 = vor.u32 %v1340, 8388608
    %v1342 = vsub.s32 0, %v1341
    %v1343 = vadd.s32 %v1338, 1
    %vm1344 = vcmp.gt.s32.totalorder %v1343, 0
    %v1345 = vsel %vm1344, %v1343, 0
    %v1346 = vshrl.u32 %v1345, 5
    %v1347 = vand.u32 %v1345, 31
    %v1348 = vsub.s32 32, %v1347
    %v1349 = vshrl.u32 683565275, %v1348
    %v1350 = vshll.u32 683565275, %v1347
    %v1351 = vshrl.u32 2475754826, %v1348
    %v1352 = vor.u32 %v1350, %v1351
    %v1353 = vshll.u32 2475754826, %v1347
    %v1354 = vshrl.u32 2131351028, %v1348
    %v1355 = vor.u32 %v1353, %v1354
    %v1356 = vshll.u32 2131351028, %v1347
    %v1357 = vshrl.u32 2102212464, %v1348
    %v1358 = vor.u32 %v1356, %v1357
    %v1359 = vshll.u32 2102212464, %v1347
    %v1360 = vshrl.u32 920167782, %v1348
    %v1361 = vor.u32 %v1359, %v1360
    %v1362 = vshll.u32 920167782, %v1347
    %v1363 = vshrl.u32 1326507024, %v1348
    %v1364 = vor.u32 %v1362, %v1363
    %vm1365 = vcmp.lt.s32.totalorder %v1346, 1
    %vm1366 = vcmp.lt.s32.totalorder %v1346, 2
    %vm1367 = vcmp.lt.s32.totalorder %v1346, 3
    %vm1368 = vcmp.lt.s32.totalorder %v1346, 4
    %v1369 = vsel %vm1365, %v1349, %v1352
    %v1370 = vsel %vm1368, %v1358, 2102212464
    %v1371 = vsel %vm1367, %v1355, %v1370
    %v1372 = vsel %vm1366, %v1369, %v1371
    %v1373 = vsel %vm1365, %v1352, %v1355
    %v1374 = vsel %vm1368, %v1361, 920167782
    %v1375 = vsel %vm1367, %v1358, %v1374
    %v1376 = vsel %vm1366, %v1373, %v1375
    %v1377 = vsel %vm1365, %v1355, %v1358
    %v1378 = vsel %vm1368, %v1364, 1326507024
    %v1379 = vsel %vm1367, %v1361, %v1378
    %v1380 = vsel %vm1366, %v1377, %v1379
    %v1381 = vshll.u32 %v1341, 8
    %v1382 = vmul.u32.u64.compose %v1381, %v1380
    %v1383 = vextract.low.u32 %v1382
    %v1384 = vextract.high.u32 %v1382
    %v1385 = vmul.u32.u64.compose %v1381, %v1376
    %v1386 = vextract.low.u32 %v1385
    %v1387 = vextract.high.u32 %v1385
    %v1388 = vmul.u32 %v1381, %v1372
    %v1389 = vadd.s32 %v1384, %v1386
    %vm1390 = vc.u32 %v1384, %v1386
    %v1391 = vadd.s32 %v1387, 1
    %v1392 = vsel %vm1390, %v1391, %v1387
    %v1393 = vadd.s32 %v1388, %v1392
    %v1394 = vadd.s32 %v1393, 536870912
    %v1395 = vshrl.u32 %v1394, 30
    %v1396 = vshll.u32 %v1395, 30
    %v1397 = vsub.s32 %v1393, %v1396
    %vm1398 = vcmp.lt.s32.totalorder %v1397, 0
    %v1399 = vsub.s32 0, %v1397
    %v1400 = vsel %vm1398, %v1399, %v1397
    %v1401 = vclz %v1400
    %v1402 = vsub.s32 %v1401, 2
    %vm1403 = vcmp.gt.s32.totalorder 0, %v1402
    %v1404 = vsel %vm1403, 0, %v1402
    %v1405 = vsub.s32 32, %v1404
    %v1406 = vshll.u32 %v1397, %v1404
    %v1407 = vshrl.u32 %v1389, %v1405
    %v1408 = vor.u32 %v1406, %v1407
    %v1409 = vsub.s32 4294967266, %v1404
    %v1410 = vadd.s32 %v1409, 127
    %v1411 = vshll.u32 %v1410, 23
    %v1412 = vor.u32 4788187, %v1411
    %v1413 = vand.u32 2147483647, %v1412
    %v1415 = vcvt.s32.f32 %v1408
    %v1416 = vmul.f32 %v1415, %v1413
    %v1417 = vxor.u32 %v1416, 2147483648
    %v1418 = vsel %vm1335, %v1417, %v1416
    %v1419 = vsub.s32 4, %v1395
    %v1420 = vsel %vm1335, %v1419, %v1395
    %v1421 = vsel %vm1334, %v568, %v1418
    %v1422 = vsel %vm1334, 0, %v1420
    %v1423 = vcosq.f32.pop %v1421
    %v1424 = vsinq.f32.pop %v1421
    %vm1425 = vweird.f32 %v568
    %v1426 = vand.u32 %v1422, 3
    %vm1427 = vcmp.lt.s32.totalorder %v1426, 2
    %vm1428 = vcmp.eq.s32.totalorder %v1426, 0
    %v1429 = vxor.u32 %v1424, 2147483648
    %v1430 = vsel %vm1428, %v1423, %v1429
    %vm1431 = vcmp.eq.s32.totalorder %v1426, 2
    %v1432 = vxor.u32 %v1423, 2147483648
    %v1433 = vsel %vm1431, %v1432, %v1424
    %v1434 = vsel %vm1427, %v1430, %v1433
    %v1435 = vsel %vm1425, nan, %v1434
    %v1436 = vand.u32 2147483647, %v574
    %vm1437 = vcmp.le.f32.partialorder %v1436, 0.7853982
    %vm1438 = vcmp.lt.s32.totalorder %v574, 0
    %v1439 = vand.u32 %v574, 2139095040
    %v1440 = vshrl.u32 %v1439, 23
    %v1441 = vsub.s32 %v1440, 127
    %v1442 = vand.u32 2147483647, %v574
    %v1443 = vand.u32 %v1442, 8388607
    %v1444 = vor.u32 %v1443, 8388608
    %v1445 = vsub.s32 0, %v1444
    %v1446 = vadd.s32 %v1441, 1
    %vm1447 = vcmp.gt.s32.totalorder %v1446, 0
    %v1448 = vsel %vm1447, %v1446, 0
    %v1449 = vshrl.u32 %v1448, 5
    %v1450 = vand.u32 %v1448, 31
    %v1451 = vsub.s32 32, %v1450
    %v1452 = vshrl.u32 683565275, %v1451
    %v1453 = vshll.u32 683565275, %v1450
    %v1454 = vshrl.u32 2475754826, %v1451
    %v1455 = vor.u32 %v1453, %v1454
    %v1456 = vshll.u32 2475754826, %v1450
    %v1457 = vshrl.u32 2131351028, %v1451
    %v1458 = vor.u32 %v1456, %v1457
    %v1459 = vshll.u32 2131351028, %v1450
    %v1460 = vshrl.u32 2102212464, %v1451
    %v1461 = vor.u32 %v1459, %v1460
    %v1462 = vshll.u32 2102212464, %v1450
    %v1463 = vshrl.u32 920167782, %v1451
    %v1464 = vor.u32 %v1462, %v1463
    %v1465 = vshll.u32 920167782, %v1450
    %v1466 = vshrl.u32 1326507024, %v1451
    %v1467 = vor.u32 %v1465, %v1466
    %vm1468 = vcmp.lt.s32.totalorder %v1449, 1
    %vm1469 = vcmp.lt.s32.totalorder %v1449, 2
    %vm1470 = vcmp.lt.s32.totalorder %v1449, 3
    %vm1471 = vcmp.lt.s32.totalorder %v1449, 4
    %v1472 = vsel %vm1468, %v1452, %v1455
    %v1473 = vsel %vm1471, %v1461, 2102212464
    %v1474 = vsel %vm1470, %v1458, %v1473
    %v1475 = vsel %vm1469, %v1472, %v1474
    %v1476 = vsel %vm1468, %v1455, %v1458
    %v1477 = vsel %vm1471, %v1464, 920167782
    %v1478 = vsel %vm1470, %v1461, %v1477
    %v1479 = vsel %vm1469, %v1476, %v1478
    %v1480 = vsel %vm1468, %v1458, %v1461
    %v1481 = vsel %vm1471, %v1467, 1326507024
    %v1482 = vsel %vm1470, %v1464, %v1481
    %v1483 = vsel %vm1469, %v1480, %v1482
    %v1484 = vshll.u32 %v1444, 8
    %v1485 = vmul.u32.u64.compose %v1484, %v1483
    %v1486 = vextract.low.u32 %v1485
    %v1487 = vextract.high.u32 %v1485
    %v1488 = vmul.u32.u64.compose %v1484, %v1479
    %v1489 = vextract.low.u32 %v1488
    %v1490 = vextract.high.u32 %v1488
    %v1491 = vmul.u32 %v1484, %v1475
    %v1492 = vadd.s32 %v1487, %v1489
    %vm1493 = vc.u32 %v1487, %v1489
    %v1494 = vadd.s32 %v1490, 1
    %v1495 = vsel %vm1493, %v1494, %v1490
    %v1496 = vadd.s32 %v1491, %v1495
    %v1497 = vadd.s32 %v1496, 536870912
    %v1498 = vshrl.u32 %v1497, 30
    %v1499 = vshll.u32 %v1498, 30
    %v1500 = vsub.s32 %v1496, %v1499
    %vm1501 = vcmp.lt.s32.totalorder %v1500, 0
    %v1502 = vsub.s32 0, %v1500
    %v1503 = vsel %vm1501, %v1502, %v1500
    %v1504 = vclz %v1503
    %v1505 = vsub.s32 %v1504, 2
    %vm1506 = vcmp.gt.s32.totalorder 0, %v1505
    %v1507 = vsel %vm1506, 0, %v1505
    %v1508 = vsub.s32 32, %v1507
    %v1509 = vshll.u32 %v1500, %v1507
    %v1510 = vshrl.u32 %v1492, %v1508
    %v1511 = vor.u32 %v1509, %v1510
    %v1512 = vsub.s32 4294967266, %v1507
    %v1513 = vadd.s32 %v1512, 127
    %v1514 = vshll.u32 %v1513, 23
    %v1515 = vor.u32 4788187, %v1514
    %v1516 = vand.u32 2147483647, %v1515
    %v1518 = vcvt.s32.f32 %v1511
    %v1519 = vmul.f32 %v1518, %v1516
    %v1520 = vxor.u32 %v1519, 2147483648
    %v1521 = vsel %vm1438, %v1520, %v1519
    %v1522 = vsub.s32 4, %v1498
    %v1523 = vsel %vm1438, %v1522, %v1498
    %v1524 = vsel %vm1437, %v574, %v1521
    %v1525 = vsel %vm1437, 0, %v1523
    %v1526 = vcosq.f32.pop %v1524
    %v1527 = vsinq.f32.pop %v1524
    %vm1528 = vweird.f32 %v574
    %v1529 = vand.u32 %v1525, 3
    %vm1530 = vcmp.lt.s32.totalorder %v1529, 2
    %vm1531 = vcmp.eq.s32.totalorder %v1529, 0
    %v1532 = vxor.u32 %v1527, 2147483648
    %v1533 = vsel %vm1531, %v1526, %v1532
    %vm1534 = vcmp.eq.s32.totalorder %v1529, 2
    %v1535 = vxor.u32 %v1526, 2147483648
    %v1536 = vsel %vm1534, %v1535, %v1527
    %v1537 = vsel %vm1530, %v1533, %v1536
    %v1538 = vsel %vm1528, nan, %v1537
    %v1539 = vmul.f32 %v1116, -0.5
    %v1540 = vmul.f32 %v1122, -0.5
    %v1541 = vmul.f32 %v1539, 1.442695
    %v1542 = vpow.pop %v1541
    %v1543 = vmul.f32 %v1540, 1.442695
    %v1544 = vpow.pop %v1543
    %v1545 = vmul.f32 %v1542, %v1542
    %v1546 = vmul.f32 %v1544, %v1544
    %v1547 = vmul.f32 %v1545, %v1545
    %v1548 = vmul.f32 %v1546, %v1546
    %v1549 = vmul.f32 %v1542, %v1228
    %v1550 = vmul.f32 %v1544, %v1332
    %v1551 = vmul.f32 %v1542, %v1435
    %v1552 = vmul.f32 %v1544, %v1538
    %v1553 = vmul.f32 %v1228, 2.0
    %v1554 = vmul.f32 %v1332, 2.0
    %v1555 = vmul.f32 %v1553, %v1228
    %v1556 = vmul.f32 %v1554, %v1332
    %v1557 = vsub.f32 1.0, %v1555
    %v1558 = vsub.f32 1.0, %v1556
    %v1559 = vmul.f32 %v1547, %v1557
    %v1560 = vmul.f32 %v1548, %v1558
    %v1561 = vsub.f32 1.0, %v1559
    %v1562 = vsub.f32 1.0, %v1560
    %v1563 = vmul.f32 %v1561, 0.5
    %v1564 = vmul.f32 %v1562, 0.5
    %v1565 = vmul.f32 %v1549, %v1549
    %v1566 = vmul.f32 %v1550, %v1550
    %v1567 = vsub.f32 %v1563, %v1565
    %v1568 = vsub.f32 %v1564, %v1566
    %v1569 = vmax.f32 %v1567, 0.0
    %v1570 = vmax.f32 %v1568, 0.0
    %v1571 = vmul.f32 %v1435, 2.0
    %v1572 = vmul.f32 %v1538, 2.0
    %v1573 = vmul.f32 %v1571, %v1435
    %v1574 = vmul.f32 %v1572, %v1538
    %v1575 = vsub.f32 1.0, %v1573
    %v1576 = vsub.f32 1.0, %v1574
    %v1577 = vmul.f32 %v1547, %v1575
    %v1578 = vmul.f32 %v1548, %v1576
    %v1579 = vsub.f32 1.0, %v1577
    %v1580 = vsub.f32 1.0, %v1578
    %v1581 = vmul.f32 %v1579, 0.5
    %v1582 = vmul.f32 %v1580, 0.5
    %v1583 = vmul.f32 %v1551, %v1551
    %v1584 = vmul.f32 %v1552, %v1552
    %v1585 = vsub.f32 %v1581, %v1583
    %v1586 = vsub.f32 %v1582, %v1584
    %v1587 = vmax.f32 %v1585, 0.0
    %v1588 = vmax.f32 %v1586, 0.0
    %1589 = vst.msk [vmem:[#allocation2] sm:$0xff] %vm30, %v20
    %1590 = vst.msk [vmem:[#allocation2 + $0x8] sm:$0xff] %vm30, %v21
    %1591 = vst.msk [vmem:[#allocation2 + $0x10] sm:$0xff] %vm30, %v22
    %1592 = vst.msk [vmem:[#allocation2 + $0x18] sm:$0xff] %vm30, %v23
    %1593 = vxpose.xlu0.b32.start [1/16] %v1549, 128
    %1594 = vxpose.xlu0.b32.cont [2/16] %v1550, 128
    %1595 = vxpose.xlu0.b32.cont [3/16] 0.0, 128
    %1596 = vxpose.xlu0.b32.cont [4/16] 0.0, 128
    %1597 = vxpose.xlu0.b32.cont [5/16] 0.0, 128
    %1598 = vxpose.xlu0.b32.cont [6/16] 0.0, 128
    %1599 = vxpose.xlu0.b32.cont [7/16] 0.0, 128
    %1600 = vxpose.xlu0.b32.cont [8/16] 0.0, 128
    %1601 = vxpose.xlu0.b32.cont [9/16] 0.0, 128
    %1602 = vxpose.xlu0.b32.cont [10/16] 0.0, 128
    %1603 = vxpose.xlu0.b32.cont [11/16] 0.0, 128
    %1604 = vxpose.xlu0.b32.cont [12/16] 0.0, 128
    %1605 = vxpose.xlu0.b32.cont [13/16] 0.0, 128
    %1606 = vxpose.xlu0.b32.cont [14/16] 0.0, 128
    %1607 = vxpose.xlu0.b32.cont [15/16] 0.0, 128
    %1608 = vxpose.xlu0.b32.end [16/16] 0.0, 128
    %v1609 = vpop.trf.xlu0
    %v1610 = vpop.trf.xlu0
    %v1611 = vpop.trf.xlu0
    %v1612 = vpop.trf.xlu0
    %v1613 = vpop.trf.xlu0
    %v1614 = vpop.trf.xlu0
    %v1615 = vpop.trf.xlu0
    %v1616 = vpop.trf.xlu0
    %v1617 = vpop.trf.xlu0
    %v1618 = vpop.trf.xlu0
    %v1619 = vpop.trf.xlu0
    %v1620 = vpop.trf.xlu0
    %v1621 = vpop.trf.xlu0
    %v1622 = vpop.trf.xlu0
    %v1623 = vpop.trf.xlu0
    %v1624 = vpop.trf.xlu0
    %1629 = vrot.lane.b32.xlu0 %v1609, 3
    %v1630 = vpop.permute.xlu0 %1629
    %1631 = vrot.lane.b32.xlu0 %v1610, 3
    %v1632 = vpop.permute.xlu0 %1631
    %1633 = vrot.lane.b32.xlu0 %v1611, 3
    %v1634 = vpop.permute.xlu0 %1633
    %1635 = vrot.lane.b32.xlu0 %v1612, 3
    %v1636 = vpop.permute.xlu0 %1635
    %vm1641 = vcmask 121880
    %1642 = vst.msk [vmem:[#allocation2] sm:$0xff] %vm1641, %v1630
    %1643 = vst.msk [vmem:[#allocation2 + $0x8] sm:$0xff] %vm1641, %v1632
    %1644 = vst.msk [vmem:[#allocation2 + $0x10] sm:$0xff] %vm1641, %v1634
    %1645 = vst.msk [vmem:[#allocation2 + $0x18] sm:$0xff] %vm1641, %v1636
    %1646 = vxpose.xlu0.b32.start [1/16] %v1551, 128
    %1647 = vxpose.xlu0.b32.cont [2/16] %v1552, 128
    %1648 = vxpose.xlu0.b32.cont [3/16] 0.0, 128
    %1649 = vxpose.xlu0.b32.cont [4/16] 0.0, 128
    %1650 = vxpose.xlu0.b32.cont [5/16] 0.0, 128
    %1651 = vxpose.xlu0.b32.cont [6/16] 0.0, 128
    %1652 = vxpose.xlu0.b32.cont [7/16] 0.0, 128
    %1653 = vxpose.xlu0.b32.cont [8/16] 0.0, 128
    %1654 = vxpose.xlu0.b32.cont [9/16] 0.0, 128
    %1655 = vxpose.xlu0.b32.cont [10/16] 0.0, 128
    %1656 = vxpose.xlu0.b32.cont [11/16] 0.0, 128
    %1657 = vxpose.xlu0.b32.cont [12/16] 0.0, 128
    %1658 = vxpose.xlu0.b32.cont [13/16] 0.0, 128
    %1659 = vxpose.xlu0.b32.cont [14/16] 0.0, 128
    %1660 = vxpose.xlu0.b32.cont [15/16] 0.0, 128
    %1661 = vxpose.xlu0.b32.end [16/16] 0.0, 128
    %v1662 = vpop.trf.xlu0
    %v1663 = vpop.trf.xlu0
    %v1664 = vpop.trf.xlu0
    %v1665 = vpop.trf.xlu0
    %v1666 = vpop.trf.xlu0
    %v1667 = vpop.trf.xlu0
    %v1668 = vpop.trf.xlu0
    %v1669 = vpop.trf.xlu0
    %v1670 = vpop.trf.xlu0
    %v1671 = vpop.trf.xlu0
    %v1672 = vpop.trf.xlu0
    %v1673 = vpop.trf.xlu0
    %v1674 = vpop.trf.xlu0
    %v1675 = vpop.trf.xlu0
    %v1676 = vpop.trf.xlu0
    %v1677 = vpop.trf.xlu0
    %1682 = vrot.lane.b32.xlu0 %v1662, 15
    %v1683 = vpop.permute.xlu0 %1682
    %1684 = vrot.lane.b32.xlu0 %v1663, 15
    %v1685 = vpop.permute.xlu0 %1684
    %1686 = vrot.lane.b32.xlu0 %v1664, 15
    %v1687 = vpop.permute.xlu0 %1686
    %1688 = vrot.lane.b32.xlu0 %v1665, 15
    %v1689 = vpop.permute.xlu0 %1688
    %vm1694 = vcmask 220280
    %1695 = vst.msk [vmem:[#allocation2] sm:$0xff] %vm1694, %v1683
    %1696 = vst.msk [vmem:[#allocation2 + $0x8] sm:$0xff] %vm1694, %v1685
    %1697 = vst.msk [vmem:[#allocation2 + $0x10] sm:$0xff] %vm1694, %v1687
    %1698 = vst.msk [vmem:[#allocation2 + $0x18] sm:$0xff] %vm1694, %v1689
    %1699 = vxpose.xlu0.b32.start [1/16] %v1569, 128
    %1700 = vxpose.xlu0.b32.cont [2/16] %v1570, 128
    %1701 = vxpose.xlu0.b32.cont [3/16] 0.0, 128
    %1702 = vxpose.xlu0.b32.cont [4/16] 0.0, 128
    %1703 = vxpose.xlu0.b32.cont [5/16] 0.0, 128
    %1704 = vxpose.xlu0.b32.cont [6/16] 0.0, 128
    %1705 = vxpose.xlu0.b32.cont [7/16] 0.0, 128
    %1706 = vxpose.xlu0.b32.cont [8/16] 0.0, 128
    %1707 = vxpose.xlu0.b32.cont [9/16] 0.0, 128
    %1708 = vxpose.xlu0.b32.cont [10/16] 0.0, 128
    %1709 = vxpose.xlu0.b32.cont [11/16] 0.0, 128
    %1710 = vxpose.xlu0.b32.cont [12/16] 0.0, 128
    %1711 = vxpose.xlu0.b32.cont [13/16] 0.0, 128
    %1712 = vxpose.xlu0.b32.cont [14/16] 0.0, 128
    %1713 = vxpose.xlu0.b32.cont [15/16] 0.0, 128
    %1714 = vxpose.xlu0.b32.end [16/16] 0.0, 128
    %v1715 = vpop.trf.xlu0
    %v1716 = vpop.trf.xlu0
    %v1717 = vpop.trf.xlu0
    %v1718 = vpop.trf.xlu0
    %v1719 = vpop.trf.xlu0
    %v1720 = vpop.trf.xlu0
    %v1721 = vpop.trf.xlu0
    %v1722 = vpop.trf.xlu0
    %v1723 = vpop.trf.xlu0
    %v1724 = vpop.trf.xlu0
    %v1725 = vpop.trf.xlu0
    %v1726 = vpop.trf.xlu0
    %v1727 = vpop.trf.xlu0
    %v1728 = vpop.trf.xlu0
    %v1729 = vpop.trf.xlu0
    %v1730 = vpop.trf.xlu0
    %vm1731 = vcmask 97280
    %1732 = vst.msk [vmem:[%s5] sm:$0xff] %vm1731, %v1715
    %1733 = vst.msk [vmem:[%s5 + $0x8] sm:$0xff] %vm1731, %v1716
    %1734 = vst.msk [vmem:[%s5 + $0x10] sm:$0xff] %vm1731, %v1717
    %1735 = vst.msk [vmem:[%s5 + $0x18] sm:$0xff] %vm1731, %v1718
    %1736 = vxpose.xlu0.b32.start [1/16] %v1587, 128
    %1737 = vxpose.xlu0.b32.cont [2/16] %v1588, 128
    %1738 = vxpose.xlu0.b32.cont [3/16] 0.0, 128
    %1739 = vxpose.xlu0.b32.cont [4/16] 0.0, 128
    %1740 = vxpose.xlu0.b32.cont [5/16] 0.0, 128
    %1741 = vxpose.xlu0.b32.cont [6/16] 0.0, 128
    %1742 = vxpose.xlu0.b32.cont [7/16] 0.0, 128
    %1743 = vxpose.xlu0.b32.cont [8/16] 0.0, 128
    %1744 = vxpose.xlu0.b32.cont [9/16] 0.0, 128
    %1745 = vxpose.xlu0.b32.cont [10/16] 0.0, 128
    %1746 = vxpose.xlu0.b32.cont [11/16] 0.0, 128
    %1747 = vxpose.xlu0.b32.cont [12/16] 0.0, 128
    %1748 = vxpose.xlu0.b32.cont [13/16] 0.0, 128
    %1749 = vxpose.xlu0.b32.cont [14/16] 0.0, 128
    %1750 = vxpose.xlu0.b32.cont [15/16] 0.0, 128
    %1751 = vxpose.xlu0.b32.end [16/16] 0.0, 128
    %v1752 = vpop.trf.xlu0
    %v1753 = vpop.trf.xlu0
    %v1754 = vpop.trf.xlu0
    %v1755 = vpop.trf.xlu0
    %v1756 = vpop.trf.xlu0
    %v1757 = vpop.trf.xlu0
    %v1758 = vpop.trf.xlu0
    %v1759 = vpop.trf.xlu0
    %v1760 = vpop.trf.xlu0
    %v1761 = vpop.trf.xlu0
    %v1762 = vpop.trf.xlu0
    %v1763 = vpop.trf.xlu0
    %v1764 = vpop.trf.xlu0
    %v1765 = vpop.trf.xlu0
    %v1766 = vpop.trf.xlu0
    %v1767 = vpop.trf.xlu0
    %1772 = vrot.lane.b32.xlu0 %v1752, 12
    %v1773 = vpop.permute.xlu0 %1772
    %1774 = vrot.lane.b32.xlu0 %v1753, 12
    %v1775 = vpop.permute.xlu0 %1774
    %1776 = vrot.lane.b32.xlu0 %v1754, 12
    %v1777 = vpop.permute.xlu0 %1776
    %1778 = vrot.lane.b32.xlu0 %v1755, 12
    %v1779 = vpop.permute.xlu0 %1778
    %vm1784 = vcmask 195680
    %1785 = vst.msk [vmem:[%s5] sm:$0xff] %vm1784, %v1773
    %1786 = vst.msk [vmem:[%s5 + $0x8] sm:$0xff] %vm1784, %v1775
    %1787 = vst.msk [vmem:[%s5 + $0x10] sm:$0xff] %vm1784, %v1777
    %1788 = vst.msk [vmem:[%s5 + $0x18] sm:$0xff] %vm1784, %v1779
    // Predicated region
    $region18: #{tpu_custom_call.1} parent=1 // pred_check
      _
    $region19: #{tpu_custom_call.1} parent=1 // pred_check_branch
      %1790 = sbr.rel (0) target = $region21
    $region20: #{tpu_custom_call.1} parent=1 // pred_region
      %s1792 = ssub.s32 512, 512
      %1793 = vsyncadd [#allocation3], %s1792
      %s1794 = sshll.u32 [#allocation2], 4
      %s1795 = int_to_ptr.vmem [resolvable:$true] %s1794
      %1800 = dma.vmem_to_hbm [thread:$0]  %s1795, 512, %s4, [#allocation3], 128, 128, 8
    $region21: #{tpu_custom_call.1} parent=1 // pred_fallthru
      _
    // Predicated region
    $region22: #{tpu_custom_call.1} parent=1 // pred_check
      _
    $region23: #{tpu_custom_call.1} parent=1 // pred_check_branch
      %1802 = sbr.rel (0) target = $region25
    $region24: #{tpu_custom_call.1} parent=1 // pred_region
      _
    $region25: #{tpu_custom_call.1} parent=1 // pred_fallthru
      _
    // Predicated region
    $region26: #{tpu_custom_call.1} parent=1 // pred_check
      _
    $region27: #{tpu_custom_call.1} parent=1 // pred_check_branch
      %1804 = sbr.rel (0) target = $region29
    $region28: #{tpu_custom_call.1} parent=1 // pred_region
      %1805 = dma.done [#allocation3], 512
    $region29: #{tpu_custom_call.1} parent=1 // pred_fallthru
      _
    // Predicated region
    $region30: #{tpu_custom_call.1} parent=1 // pred_check
      _
    $region31: #{tpu_custom_call.1} parent=1 // pred_check_branch
      %1807 = sbr.rel (0) target = $region33
    $region32: #{tpu_custom_call.1} parent=1 // pred_region
      _
    $region33: #{tpu_custom_call.1} parent=1 // pred_fallthru
      _
    %1808 = vsyncpa [#allocation3], 1

</llo_original>
